<compile_context>
chip_gen: v7x
topology: tpu7x:2x2x1
jax: 0.10.0
libtpu: 0.0.40
codegen_flags: <defaults>
</compile_context>

<pallas_src>
import functools

import jax
import jax.numpy as jnp
from jax import lax
from jax.experimental import pallas as pl
from jax.experimental.pallas import tpu as pltpu


def _round_up(x, m):
    return ((x + m - 1) // m) * m


def _x3d_stem_kernel(patches_ref, w_ref, bias_ref, out_ref, *,
                     kt, stride_t, k_pad, t_out, cout, tile_hw):
    # patches_ref: (1, t_pad*K_pad, tile_hw) bf16 im2col patches, HW on lanes, rows = (frame, K_pad)
    # w_ref      : (Cout, kt*K_pad) bf16     spatial weight with temporal taps + BN scale folded in
    # bias_ref   : (Cout, 1) f32             folded BN bias = beta - mean * scale
    # out_ref    : (1, t_out, Cout, tile_hw) f32
    w = w_ref[...]                                                   # loop-invariant
    # Hoist the lane-broadcast of the bias out of the frame loop (no CSE of broadcasts).
    bias = jnp.broadcast_to(bias_ref[...], (cout, tile_hw))          # (Cout, tile_hw)
    win_rows = kt * k_pad
    # Fully unrolled frame loop with static, k_pad-aligned window starts: the kt-frame temporal
    # window is a contiguous, sublane-tile-aligned row range (k_pad % 16 == 0 for bf16), and the
    # scheduler can interleave MXU push/pop, the VPU bias+ReLU and stores across frames.
    for t in range(t_out):
        start = t * stride_t * k_pad                                 # static Python int
        win = patches_ref[0, pl.ds(start, win_rows), :]              # (kt*K_pad, tile_hw)
        # Single MXU matmul fuses: spatial conv + depthwise temporal conv + BN scale.
        acc = jnp.dot(w, win, preferred_element_type=jnp.float32)    # (Cout, tile_hw) f32
        out_ref[0, t, :, :] = jnp.maximum(acc + bias, 0.0).astype(out_ref.dtype)


def _pick_tile_hw(hw_pad, bytes_per_col, budget_bytes, min_tiles):
    """Largest multiple-of-128 divisor of hw_pad that fits the block budget with >= min_tiles tiles."""
    choices = [c for c in range(128, hw_pad + 1, 128) if hw_pad % c == 0]
    fit = [c for c in choices if c * bytes_per_col <= budget_bytes] or [choices[0]]
    good = [c for c in fit if hw_pad // c >= min_tiles]
    return max(good) if good else min(fit)


def x3d_stem_forward(x, w_xy, w_t, gamma, beta, run_mean, run_var,
                     *, kernel, stride, padding, eps=1e-5):
    """X3D stem forward (eval-mode BN).  x: (N, Cin, T, H, W) -> (N, Cout, T_out, H_out, W_out)."""
    kt, kh, kw = kernel
    st, sh, sw = stride
    pt, ph, pw = padding
    n, cin, t, h, w = x.shape
    cout = w_xy.shape[-1]

    h_out = (h + 2 * ph - kh) // sh + 1
    w_out = (w + 2 * pw - kw) // sw + 1
    t_out = (t + 2 * pt - kt) // st + 1
    hw = h_out * w_out
    hw_pad = _round_up(hw, 128)               # lane-dense stores even for small spatial sizes
    k_flat = kh * kw * cin
    k_pad = _round_up(k_flat, 16)             # each frame = whole number of bf16 sublane tiles
    t_pad = t + 2 * pt

    # ---- glue (plain JAX, bf16): im2col built directly in final (N, T_pad*K_pad, HW_pad) layout
    xl = jnp.transpose(x, (0, 2, 1, 3, 4)).astype(jnp.bfloat16)        # (N, T, Cin, H, W)
    xp = jnp.pad(xl, ((0, 0), (0, 0), (0, 0), (ph, ph), (pw, pw)))
    rows = []
    for dh in range(kh):
        for dw in range(kw):
            sl = xp[:, :, :, dh:dh + (h_out - 1) * sh + 1:sh,
                              dw:dw + (w_out - 1) * sw + 1:sw]         # (N, T, Cin, H_out, W_out)
            rows.append(sl.reshape(n, t, cin, hw))
    if k_pad > k_flat:
        rows.append(jnp.zeros((n, t, k_pad - k_flat, hw), jnp.bfloat16))
    patches = jnp.concatenate(rows, axis=2)                            # (N, T, K_pad, HW)
    # Temporal zero frames are valid only because conv_xy has no bias (zero input frames give a
    # zero spatial-conv output, matching the temporal conv's zero padding).  HW pad columns are
    # garbage in the output and get sliced off below.
    patches = jnp.pad(patches, ((0, 0), (pt, pt), (0, 0), (0, hw_pad - hw)))
    patches = patches.reshape(n, t_pad * k_pad, hw_pad)                # rows flattened as (frame, K_pad)

    # ---- fold temporal taps + BN scale into one matmul weight; fold BN bias separately --------
    scale = gamma / jnp.sqrt(run_var + eps)                            # (Cout,)
    bias = (beta - run_mean * scale).reshape(cout, 1).astype(jnp.float32)
    w_xy_flat = w_xy.reshape(k_flat, cout)                             # (K, Cout), (kh,kw,Cin) order
    w_fused = w_t[:, None, :] * (w_xy_flat * scale[None, :])[None, :, :]   # (kt, K, Cout) f32
    w_fused = jnp.pad(w_fused, ((0, 0), (0, k_pad - k_flat), (0, 0)))       # (kt, K_pad, Cout)
    w_fused = jnp.transpose(w_fused, (2, 0, 1)).reshape(cout, kt * k_pad)   # (Cout, kt*K_pad)
    w_fused = w_fused.astype(jnp.bfloat16)

    # ---- generation-aware HW tiling + VMEM budget ----------------------------------------------
    try:
        vmem_cap = int(getattr(pltpu.get_tpu_info(), "vmem_capacity_bytes", 64 << 20))
    except Exception:       # info unavailable -> assume the smallest (v7x) per-core VMEM
        vmem_cap = 64 << 20
    block_budget = (3 << 20) if vmem_cap <= (64 << 20) else (5 << 20)  # per (in+out) block
    cout_pad = _round_up(cout, 8)
    bytes_per_col = t_pad * k_pad * 2 + t_out * cout_pad * 4           # bf16 in + f32 out per HW column
    min_tiles = max(1, -(-8 // max(n, 1)))                             # aim for >=8 grid steps
    tile_hw = _pick_tile_hw(hw_pad, bytes_per_col, block_budget, min_tiles)
    assert hw_pad % tile_hw == 0
    n_hw = hw_pad // tile_hw

    in_block = t_pad * k_pad * tile_hw * 2
    out_block = t_out * cout_pad * tile_hw * 4
    w_block = _round_up(cout, 16) * _round_up(kt * k_pad, 128) * 2
    bias_block = cout_pad * 128 * 4
    vmem_need = 2 * (in_block + out_block) + 2 * (w_block + bias_block)
    vmem_limit = int(min(max(vmem_need + (8 << 20), 16 << 20), (vmem_cap * 3) // 4))

    kern = functools.partial(_x3d_stem_kernel, kt=kt, stride_t=st, k_pad=k_pad,
                             t_out=t_out, cout=cout, tile_hw=tile_hw)
    out = pl.pallas_call(
        kern,
        out_shape=jax.ShapeDtypeStruct((n, t_out, cout, hw_pad), x.dtype),
        grid_spec=pltpu.PrefetchScalarGridSpec(
            num_scalar_prefetch=0,
            grid=(n, n_hw),
            in_specs=[
                pl.BlockSpec((1, t_pad * k_pad, tile_hw), lambda b, s: (b, 0, s)),
                pl.BlockSpec((cout, kt * k_pad), lambda b, s: (0, 0)),
                pl.BlockSpec((cout, 1), lambda b, s: (0, 0)),
            ],
            out_specs=pl.BlockSpec((1, t_out, cout, tile_hw), lambda b, s: (b, 0, 0, s)),
        ),
        compiler_params=pltpu.CompilerParams(
            dimension_semantics=("parallel", "parallel"),
            vmem_limit_bytes=vmem_limit),
    )(patches, w_fused, bias)

    out = out[..., :hw].reshape(n, t_out, cout, h_out, w_out)
    return jnp.transpose(out, (0, 2, 1, 3, 4))                         # back to NCTHW


def x3d_stem_reference(x, w_xy, w_t, gamma, beta, run_mean, run_var,
                       *, kernel, stride, padding, eps=1e-5):
    """Pure-JAX reference mirroring the PyTorch module (BN in eval mode), full precision."""
    kt, kh, kw = kernel
    st, sh, sw = stride
    pt, ph, pw = padding
    cout = w_xy.shape[-1]

    # conv_xy: (Cout, Cin, 1, kh, kw)
    w_xy_t = jnp.transpose(w_xy, (3, 2, 0, 1))[:, :, None, :, :]
    dn = lax.conv_dimension_numbers(x.shape, w_xy_t.shape, ('NCDHW', 'OIDHW', 'NCDHW'))
    y = lax.conv_general_dilated(x, w_xy_t, window_strides=(1, sh, sw),
                                 padding=[(0, 0), (ph, ph), (pw, pw)],
                                 dimension_numbers=dn, precision=lax.Precision.HIGHEST)
    # depthwise temporal conv: (Cout, 1, kt, 1, 1), groups = Cout
    w_t_t = jnp.transpose(w_t, (1, 0)).reshape(cout, 1, kt, 1, 1)
    dn2 = lax.conv_dimension_numbers(y.shape, w_t_t.shape, ('NCDHW', 'OIDHW', 'NCDHW'))
    y = lax.conv_general_dilated(y, w_t_t, window_strides=(st, 1, 1),
                                 padding=[(pt, pt), (0, 0), (0, 0)],
                                 dimension_numbers=dn2, feature_group_count=cout,
                                 precision=lax.Precision.HIGHEST)
    s = gamma / jnp.sqrt(run_var + eps)
    b = beta - run_mean * s
    y = y * s[None, :, None, None, None] + b[None, :, None, None, None]
    return jnp.maximum(y, 0.0)


if __name__ == "__main__":
    # Small X3D-stem-like configuration.
    N, CIN, T, H, W = 2, 3, 8, 16, 16
    COUT = 24
    KERNEL = (5, 3, 3)      # (kt, kh, kw)
    STRIDE = (1, 2, 2)      # (st, sh, sw)
    PADDING = (2, 1, 1)     # (pt, ph, pw)
    EPS = 1e-5

    key = jax.random.PRNGKey(0)
    k1, k2, k3, k4, k5, k6, k7 = jax.random.split(key, 7)
    x = jax.random.normal(k1, (N, CIN, T, H, W), jnp.float32)
    # conv_xy weight stored as (kh, kw, Cin, Cout); depthwise temporal conv as (kt, Cout)
    w_xy = 0.1 * jax.random.normal(k2, (KERNEL[1], KERNEL[2], CIN, COUT), jnp.float32)
    w_t = 0.2 * jax.random.normal(k3, (KERNEL[0], COUT), jnp.float32)
    # BatchNorm parameters / running stats (inference mode).
    gamma = 1.0 + 0.1 * jax.random.normal(k4, (COUT,), jnp.float32)
    beta = 0.1 * jax.random.normal(k5, (COUT,), jnp.float32)
    run_mean = 0.1 * jax.random.normal(k6, (COUT,), jnp.float32)
    run_var = 0.5 + jnp.abs(jax.random.normal(k7, (COUT,), jnp.float32))

    out = x3d_stem_forward(x, w_xy, w_t, gamma, beta, run_mean, run_var,
                           kernel=KERNEL, stride=STRIDE, padding=PADDING, eps=EPS)
    out = jax.block_until_ready(out)

    ref = x3d_stem_reference(x, w_xy, w_t, gamma, beta, run_mean, run_var,
                             kernel=KERNEL, stride=STRIDE, padding=PADDING, eps=EPS)
    ref = jax.block_until_ready(ref)

    assert out.shape == ref.shape, (out.shape, ref.shape)
    # Kernel operands are bf16 (same rounding the MXU applied at default precision before); the
    # reference runs at HIGHEST precision, so allow ~1e-3-level input-rounding error with margin.
    max_err = float(jnp.max(jnp.abs(out - ref)))
    assert jnp.allclose(out, ref, atol=1e-2, rtol=1e-2), max_err

    print("KERNEL_OK")
</pallas_src>

<mosaic_0001>
module attributes {stable_mosaic.version = 11 : i64} {
  func.func @_x3d_stem_kernel(%arg0: i32, %arg1: i32, %arg2: memref<1x384x128xbf16, #tpu.memory_space<vmem>>, %arg3: memref<24x160xbf16, #tpu.memory_space<vmem>>, %arg4: memref<24x1xf32, #tpu.memory_space<vmem>>, %arg5: memref<1x8x24x128xf32, #tpu.memory_space<vmem>>) attributes {dimension_semantics = [#tpu.dimension_semantics<parallel>, #tpu.dimension_semantics<parallel>], iteration_bounds = array<i64: 2, 1>, scalar_prefetch = 0 : i64, scratch_operands = 0 : i64, tpu.core_type = #tpu.core_type<tc>, window_params = [{transform_indices = @transform_0, window_bounds = array<i64: 1, 384, 128>}, {pipeline_mode = #tpu.pipeline_mode<synchronous>, transform_indices = @transform_1, window_bounds = array<i64: 24, 160>}, {pipeline_mode = #tpu.pipeline_mode<synchronous>, transform_indices = @transform_2, window_bounds = array<i64: 24, 1>}, {transform_indices = @transform_3, window_bounds = array<i64: 1, 8, 24, 128>}]} {
    %c0 = arith.constant 0 : index
    %c0_0 = arith.constant 0 : index
    %0 = vector.load %arg3[%c0, %c0_0] : memref<24x160xbf16, #tpu.memory_space<vmem>>, vector<24x160xbf16>
    %c0_1 = arith.constant 0 : index
    %c0_2 = arith.constant 0 : index
    %1 = vector.load %arg4[%c0_1, %c0_2] : memref<24x1xf32, #tpu.memory_space<vmem>>, vector<24x1xf32>
    %2 = vector.shape_cast %1 : vector<24x1xf32> to vector<24x1xf32>
    %3 = vector.broadcast %2 : vector<24x1xf32> to vector<24x128xf32>
    %c0_3 = arith.constant 0 : index
    %c0_4 = arith.constant 0 : index
    %c0_5 = arith.constant 0 : index
    %4 = vector.load %arg2[%c0_3, %c0_4, %c0_5] : memref<1x384x128xbf16, #tpu.memory_space<vmem>>, vector<1x160x128xbf16>
    %5 = vector.shape_cast %4 : vector<1x160x128xbf16> to vector<160x128xbf16>
    %cst = arith.constant dense<0.000000e+00> : vector<24x128xf32>
    %6 = tpu.matmul %0, %5, %cst {dimension_numbers = #tpu.dot_dimension_numbers<[1], [0], [0], [1], [0, 0, 1, 1], [], []>} : vector<24x160xbf16>, vector<160x128xbf16>, vector<24x128xf32> -> vector<24x128xf32>
    %7 = arith.addf %6, %3 : vector<24x128xf32>
    %cst_6 = arith.constant 0.000000e+00 : f32
    %8 = vector.broadcast %cst_6 : f32 to vector<24x128xf32>
    %9 = arith.maximumf %7, %8 : vector<24x128xf32>
    %c0_7 = arith.constant 0 : index
    %c0_8 = arith.constant 0 : index
    %c0_9 = arith.constant 0 : index
    %c0_10 = arith.constant 0 : index
    %10 = vector.load %arg5[%c0_7, %c0_8, %c0_9, %c0_10] : memref<1x8x24x128xf32, #tpu.memory_space<vmem>>, vector<1x1x24x128xf32>
    %11 = vector.shape_cast %10 : vector<1x1x24x128xf32> to vector<24x128xf32>
    %12 = vector.shape_cast %9 : vector<24x128xf32> to vector<1x1x24x128xf32>
    tpu.vector_store %arg5[%c0_7, %c0_8, %c0_9, %c0_10], %12 {strides = array<i32>} : memref<1x8x24x128xf32, #tpu.memory_space<vmem>>, vector<1x1x24x128xf32>,
    %c0_11 = arith.constant 0 : index
    %c32 = arith.constant 32 : index
    %c0_12 = arith.constant 0 : index
    %13 = vector.load %arg2[%c0_11, %c32, %c0_12] : memref<1x384x128xbf16, #tpu.memory_space<vmem>>, vector<1x160x128xbf16>
    %14 = vector.shape_cast %13 : vector<1x160x128xbf16> to vector<160x128xbf16>
    %cst_13 = arith.constant dense<0.000000e+00> : vector<24x128xf32>
    %15 = tpu.matmul %0, %14, %cst_13 {dimension_numbers = #tpu.dot_dimension_numbers<[1], [0], [0], [1], [0, 0, 1, 1], [], []>} : vector<24x160xbf16>, vector<160x128xbf16>, vector<24x128xf32> -> vector<24x128xf32>
    %16 = arith.addf %15, %3 : vector<24x128xf32>
    %cst_14 = arith.constant 0.000000e+00 : f32
    %17 = vector.broadcast %cst_14 : f32 to vector<24x128xf32>
    %18 = arith.maximumf %16, %17 : vector<24x128xf32>
    %c0_15 = arith.constant 0 : index
    %c1 = arith.constant 1 : index
    %c0_16 = arith.constant 0 : index
    %c0_17 = arith.constant 0 : index
    %19 = vector.load %arg5[%c0_15, %c1, %c0_16, %c0_17] : memref<1x8x24x128xf32, #tpu.memory_space<vmem>>, vector<1x1x24x128xf32>
    %20 = vector.shape_cast %19 : vector<1x1x24x128xf32> to vector<24x128xf32>
    %21 = vector.shape_cast %18 : vector<24x128xf32> to vector<1x1x24x128xf32>
    tpu.vector_store %arg5[%c0_15, %c1, %c0_16, %c0_17], %21 {strides = array<i32>} : memref<1x8x24x128xf32, #tpu.memory_space<vmem>>, vector<1x1x24x128xf32>,
    %c0_18 = arith.constant 0 : index
    %c64 = arith.constant 64 : index
    %c0_19 = arith.constant 0 : index
    %22 = vector.load %arg2[%c0_18, %c64, %c0_19] : memref<1x384x128xbf16, #tpu.memory_space<vmem>>, vector<1x160x128xbf16>
    %23 = vector.shape_cast %22 : vector<1x160x128xbf16> to vector<160x128xbf16>
    %cst_20 = arith.constant dense<0.000000e+00> : vector<24x128xf32>
    %24 = tpu.matmul %0, %23, %cst_20 {dimension_numbers = #tpu.dot_dimension_numbers<[1], [0], [0], [1], [0, 0, 1, 1], [], []>} : vector<24x160xbf16>, vector<160x128xbf16>, vector<24x128xf32> -> vector<24x128xf32>
    %25 = arith.addf %24, %3 : vector<24x128xf32>
    %cst_21 = arith.constant 0.000000e+00 : f32
    %26 = vector.broadcast %cst_21 : f32 to vector<24x128xf32>
    %27 = arith.maximumf %25, %26 : vector<24x128xf32>
    %c0_22 = arith.constant 0 : index
    %c2 = arith.constant 2 : index
    %c0_23 = arith.constant 0 : index
    %c0_24 = arith.constant 0 : index
    %28 = vector.load %arg5[%c0_22, %c2, %c0_23, %c0_24] : memref<1x8x24x128xf32, #tpu.memory_space<vmem>>, vector<1x1x24x128xf32>
    %29 = vector.shape_cast %28 : vector<1x1x24x128xf32> to vector<24x128xf32>
    %30 = vector.shape_cast %27 : vector<24x128xf32> to vector<1x1x24x128xf32>
    tpu.vector_store %arg5[%c0_22, %c2, %c0_23, %c0_24], %30 {strides = array<i32>} : memref<1x8x24x128xf32, #tpu.memory_space<vmem>>, vector<1x1x24x128xf32>,
    %c0_25 = arith.constant 0 : index
    %c96 = arith.constant 96 : index
    %c0_26 = arith.constant 0 : index
    %31 = vector.load %arg2[%c0_25, %c96, %c0_26] : memref<1x384x128xbf16, #tpu.memory_space<vmem>>, vector<1x160x128xbf16>
    %32 = vector.shape_cast %31 : vector<1x160x128xbf16> to vector<160x128xbf16>
    %cst_27 = arith.constant dense<0.000000e+00> : vector<24x128xf32>
    %33 = tpu.matmul %0, %32, %cst_27 {dimension_numbers = #tpu.dot_dimension_numbers<[1], [0], [0], [1], [0, 0, 1, 1], [], []>} : vector<24x160xbf16>, vector<160x128xbf16>, vector<24x128xf32> -> vector<24x128xf32>
    %34 = arith.addf %33, %3 : vector<24x128xf32>
    %cst_28 = arith.constant 0.000000e+00 : f32
    %35 = vector.broadcast %cst_28 : f32 to vector<24x128xf32>
    %36 = arith.maximumf %34, %35 : vector<24x128xf32>
    %c0_29 = arith.constant 0 : index
    %c3 = arith.constant 3 : index
    %c0_30 = arith.constant 0 : index
    %c0_31 = arith.constant 0 : index
    %37 = vector.load %arg5[%c0_29, %c3, %c0_30, %c0_31] : memref<1x8x24x128xf32, #tpu.memory_space<vmem>>, vector<1x1x24x128xf32>
    %38 = vector.shape_cast %37 : vector<1x1x24x128xf32> to vector<24x128xf32>
    %39 = vector.shape_cast %36 : vector<24x128xf32> to vector<1x1x24x128xf32>
    tpu.vector_store %arg5[%c0_29, %c3, %c0_30, %c0_31], %39 {strides = array<i32>} : memref<1x8x24x128xf32, #tpu.memory_space<vmem>>, vector<1x1x24x128xf32>,
    %c0_32 = arith.constant 0 : index
    %c128 = arith.constant 128 : index
    %c0_33 = arith.constant 0 : index
    %40 = vector.load %arg2[%c0_32, %c128, %c0_33] : memref<1x384x128xbf16, #tpu.memory_space<vmem>>, vector<1x160x128xbf16>
    %41 = vector.shape_cast %40 : vector<1x160x128xbf16> to vector<160x128xbf16>
    %cst_34 = arith.constant dense<0.000000e+00> : vector<24x128xf32>
    %42 = tpu.matmul %0, %41, %cst_34 {dimension_numbers = #tpu.dot_dimension_numbers<[1], [0], [0], [1], [0, 0, 1, 1], [], []>} : vector<24x160xbf16>, vector<160x128xbf16>, vector<24x128xf32> -> vector<24x128xf32>
    %43 = arith.addf %42, %3 : vector<24x128xf32>
    %cst_35 = arith.constant 0.000000e+00 : f32
    %44 = vector.broadcast %cst_35 : f32 to vector<24x128xf32>
    %45 = arith.maximumf %43, %44 : vector<24x128xf32>
    %c0_36 = arith.constant 0 : index
    %c4 = arith.constant 4 : index
    %c0_37 = arith.constant 0 : index
    %c0_38 = arith.constant 0 : index
    %46 = vector.load %arg5[%c0_36, %c4, %c0_37, %c0_38] : memref<1x8x24x128xf32, #tpu.memory_space<vmem>>, vector<1x1x24x128xf32>
    %47 = vector.shape_cast %46 : vector<1x1x24x128xf32> to vector<24x128xf32>
    %48 = vector.shape_cast %45 : vector<24x128xf32> to vector<1x1x24x128xf32>
    tpu.vector_store %arg5[%c0_36, %c4, %c0_37, %c0_38], %48 {strides = array<i32>} : memref<1x8x24x128xf32, #tpu.memory_space<vmem>>, vector<1x1x24x128xf32>,
    %c0_39 = arith.constant 0 : index
    %c160 = arith.constant 160 : index
    %c0_40 = arith.constant 0 : index
    %49 = vector.load %arg2[%c0_39, %c160, %c0_40] : memref<1x384x128xbf16, #tpu.memory_space<vmem>>, vector<1x160x128xbf16>
    %50 = vector.shape_cast %49 : vector<1x160x128xbf16> to vector<160x128xbf16>
    %cst_41 = arith.constant dense<0.000000e+00> : vector<24x128xf32>
    %51 = tpu.matmul %0, %50, %cst_41 {dimension_numbers = #tpu.dot_dimension_numbers<[1], [0], [0], [1], [0, 0, 1, 1], [], []>} : vector<24x160xbf16>, vector<160x128xbf16>, vector<24x128xf32> -> vector<24x128xf32>
    %52 = arith.addf %51, %3 : vector<24x128xf32>
    %cst_42 = arith.constant 0.000000e+00 : f32
    %53 = vector.broadcast %cst_42 : f32 to vector<24x128xf32>
    %54 = arith.maximumf %52, %53 : vector<24x128xf32>
    %c0_43 = arith.constant 0 : index
    %c5 = arith.constant 5 : index
    %c0_44 = arith.constant 0 : index
    %c0_45 = arith.constant 0 : index
    %55 = vector.load %arg5[%c0_43, %c5, %c0_44, %c0_45] : memref<1x8x24x128xf32, #tpu.memory_space<vmem>>, vector<1x1x24x128xf32>
    %56 = vector.shape_cast %55 : vector<1x1x24x128xf32> to vector<24x128xf32>
    %57 = vector.shape_cast %54 : vector<24x128xf32> to vector<1x1x24x128xf32>
    tpu.vector_store %arg5[%c0_43, %c5, %c0_44, %c0_45], %57 {strides = array<i32>} : memref<1x8x24x128xf32, #tpu.memory_space<vmem>>, vector<1x1x24x128xf32>,
    %c0_46 = arith.constant 0 : index
    %c192 = arith.constant 192 : index
    %c0_47 = arith.constant 0 : index
    %58 = vector.load %arg2[%c0_46, %c192, %c0_47] : memref<1x384x128xbf16, #tpu.memory_space<vmem>>, vector<1x160x128xbf16>
    %59 = vector.shape_cast %58 : vector<1x160x128xbf16> to vector<160x128xbf16>
    %cst_48 = arith.constant dense<0.000000e+00> : vector<24x128xf32>
    %60 = tpu.matmul %0, %59, %cst_48 {dimension_numbers = #tpu.dot_dimension_numbers<[1], [0], [0], [1], [0, 0, 1, 1], [], []>} : vector<24x160xbf16>, vector<160x128xbf16>, vector<24x128xf32> -> vector<24x128xf32>
    %61 = arith.addf %60, %3 : vector<24x128xf32>
    %cst_49 = arith.constant 0.000000e+00 : f32
    %62 = vector.broadcast %cst_49 : f32 to vector<24x128xf32>
    %63 = arith.maximumf %61, %62 : vector<24x128xf32>
    %c0_50 = arith.constant 0 : index
    %c6 = arith.constant 6 : index
    %c0_51 = arith.constant 0 : index
    %c0_52 = arith.constant 0 : index
    %64 = vector.load %arg5[%c0_50, %c6, %c0_51, %c0_52] : memref<1x8x24x128xf32, #tpu.memory_space<vmem>>, vector<1x1x24x128xf32>
    %65 = vector.shape_cast %64 : vector<1x1x24x128xf32> to vector<24x128xf32>
    %66 = vector.shape_cast %63 : vector<24x128xf32> to vector<1x1x24x128xf32>
    tpu.vector_store %arg5[%c0_50, %c6, %c0_51, %c0_52], %66 {strides = array<i32>} : memref<1x8x24x128xf32, #tpu.memory_space<vmem>>, vector<1x1x24x128xf32>,
    %c0_53 = arith.constant 0 : index
    %c224 = arith.constant 224 : index
    %c0_54 = arith.constant 0 : index
    %67 = vector.load %arg2[%c0_53, %c224, %c0_54] : memref<1x384x128xbf16, #tpu.memory_space<vmem>>, vector<1x160x128xbf16>
    %68 = vector.shape_cast %67 : vector<1x160x128xbf16> to vector<160x128xbf16>
    %cst_55 = arith.constant dense<0.000000e+00> : vector<24x128xf32>
    %69 = tpu.matmul %0, %68, %cst_55 {dimension_numbers = #tpu.dot_dimension_numbers<[1], [0], [0], [1], [0, 0, 1, 1], [], []>} : vector<24x160xbf16>, vector<160x128xbf16>, vector<24x128xf32> -> vector<24x128xf32>
    %70 = arith.addf %69, %3 : vector<24x128xf32>
    %cst_56 = arith.constant 0.000000e+00 : f32
    %71 = vector.broadcast %cst_56 : f32 to vector<24x128xf32>
    %72 = arith.maximumf %70, %71 : vector<24x128xf32>
    %c0_57 = arith.constant 0 : index
    %c7 = arith.constant 7 : index
    %c0_58 = arith.constant 0 : index
    %c0_59 = arith.constant 0 : index
    %73 = vector.load %arg5[%c0_57, %c7, %c0_58, %c0_59] : memref<1x8x24x128xf32, #tpu.memory_space<vmem>>, vector<1x1x24x128xf32>
    %74 = vector.shape_cast %73 : vector<1x1x24x128xf32> to vector<24x128xf32>
    %75 = vector.shape_cast %72 : vector<24x128xf32> to vector<1x1x24x128xf32>
    tpu.vector_store %arg5[%c0_57, %c7, %c0_58, %c0_59], %75 {strides = array<i32>} : memref<1x8x24x128xf32, #tpu.memory_space<vmem>>, vector<1x1x24x128xf32>,
    return
  }
  func.func @transform_0(%arg0: i32, %arg1: i32) -> (i32, i32, i32) {
    %c0_i32 = arith.constant 0 : i32
    %c0_i32_0 = arith.constant 0 : i32
    return %arg0, %c0_i32, %arg1 : i32, i32, i32
  }
  func.func @transform_1(%arg0: i32, %arg1: i32) -> (i32, i32) {
    %c0_i32 = arith.constant 0 : i32
    %c0_i32_0 = arith.constant 0 : i32
    %c0_i32_1 = arith.constant 0 : i32
    return %c0_i32, %c0_i32_0 : i32, i32
  }
  func.func @transform_2(%arg0: i32, %arg1: i32) -> (i32, i32) {
    %c0_i32 = arith.constant 0 : i32
    %c0_i32_0 = arith.constant 0 : i32
    %c0_i32_1 = arith.constant 0 : i32
    return %c0_i32, %c0_i32_0 : i32, i32
  }
  func.func @transform_3(%arg0: i32, %arg1: i32) -> (i32, i32, i32, i32) {
    %c0_i32 = arith.constant 0 : i32
    %c0_i32_0 = arith.constant 0 : i32
    %c0_i32_1 = arith.constant 0 : i32
    return %arg0, %c0_i32, %c0_i32_0, %arg1 : i32, i32, i32, i32
  }
}

</mosaic_0001>

<llo_original>
// kernel: tpu_custom_call.1
$region0: #{tpu_custom_call.1}
  #allocation0 [shape = 'u32[]', space=smem, size = 0x4, offset = 0x4, fixed_abs, tag = 'smem constant byte address 0x4 - core index']
  #allocation1 [shape = 'u32[144,128]{1,0:T(1,128)}', space=vmem, size = 0x12000, scoped, tag = 'internal scratch']
  %s0 = inlined_call_operand.hbm [shape: bf16[2,384,128], index: 0, kind: input, shape index: {}]
  %s1 = inlined_call_operand.vmem [shape: bf16[24,160], index: 1, kind: input, shape index: {}]
  %s2 = inlined_call_operand.vmem [shape: f32[24,1], index: 2, kind: input, shape index: {}]
  %s3 = inlined_call_operand.hbm [shape: f32[2,8,24,128], index: 3, kind: output, shape index: {}]
  %s4 = sld [smem:[#allocation0]]
  $region49: #{tpu_custom_call.1} parent=0
    _
  %s6 = ssub.s32 1, %s4
  %s7 = scalar_select 0, %s6, %s4
  $region1: #{tpu_custom_call.1} parent=0
    #allocation2 [shape = 'u8[196608]{0}', space=vmem, size = 0x30000, scoped, tag = 'input window, operand 0']
    #allocation3 [shape = 's32[2]{0}', space=sflag, size = 0x8, scoped, tag = 'scoped memory for tpu_custom_call.1']
    #allocation4 [shape = 's32[2]{0}', space=sflag, size = 0x8, scoped, tag = 'scoped memory for tpu_custom_call.1']
    #allocation5 [shape = 'u8[196608]{0}', space=vmem, size = 0x30000, scoped, tag = 'output window, operand 0']
    %8 = vsyncpa [#allocation3], 0
    %s9 = scalar_lea.sflag [#allocation3], 1
    %10 = vsyncpa %s9, 0
    %11 = vsyncpa [#allocation4], 0
    %s12 = scalar_lea.sflag [#allocation4], 1
    %13 = vsyncpa %s12, 0
    loop: start=0, step=1, limit=4
    $region2: #{tpu_custom_call.1} parent=1 // loop_pre_header
      _
    $region3: #{tpu_custom_call.1} parent=1 // loop_header
      %s15 = sphi 0, %s19
      %p16 = scmp.ge.s32.totalorder %s15, 4
      %s22 = sphi 0, %s34
      %s23 = sphi 0, %s30
      %s24 = sphi 0, %s22
      %s25 = sphi 0, %s23
      %s26 = sphi 0, %s24
      %s27 = sphi 0, %s25
      %s39 = sphi 0, %s41
      %s42 = sphi 0, %s39
      %s43 = sphi 0, %s42
      %s59 = sphi 0, %s43
      %s63 = sphi 0, %s63
      %s65 = sphi 0, %s63
      %s66 = sphi 0, %s65
      %s80 = sphi 0, %s66
      %s84 = sphi 0, %s84
      %s86 = sphi 0, %s84
      %s87 = sphi 0, %s86
      %s101 = sphi 0, %s87
      %s109 = sphi 0, %s111
      %s112 = sphi 0, %s109
      %s113 = sphi 0, %s112
      %s129 = sphi 0, %s113
    $region4: #{tpu_custom_call.1} parent=1 // loop_header_branch
      %18 = sbr.rel (%p16) target = $region8
    $region5: #{tpu_custom_call.1} parent=1 // loop_body
      %s20 = ssub.s32 %s15, 1
      %s21 = ssub.s32 %s15, 2
      %s28 = sadd.s32 1, %s23
      %p29 = scmp.ge.s32.totalorder %s28, 1
      %s30 = scalar_select %p29, 0, %s28
      %s31 = sadd.s32 1, %s22
      %s32 = scalar_select %p29, %s31, %s22
      %p33 = scmp.ge.s32.totalorder %s32, 2
      %s34 = scalar_select %p33, 0, %s32
      %s35 = ssub.s32 %s22, %s34
      %s36 = ssub.s32 %s23, %s30
      %s37 = sor.u32 %s35, %s36
      %p38 = scmp.eq.s32.totalorder %s37, 0
      %s40 = sadd.s32 %s39, 1
      %s41 = scalar_select %p38, %s39, %s40
      %p44 = pneg %p38
      %p45 = scmp.eq.s32.totalorder %s15, 1
      %p46 = por %p44, %p45
      %p47 = scmp.ne.s32.totalorder %s39, %s42
      %p48 = scmp.eq.s32.totalorder %s15, 0
      %p49 = por %p47, %p48
      %p50 = scmp.ne.s32.totalorder %s39, %s42
      %p51 = scmp.eq.s32.totalorder %s20, 1
      %p52 = por %p50, %p51
      %p53 = scmp.ne.s32.totalorder %s42, %s43
      %p54 = scmp.eq.s32.totalorder %s20, 0
      %p55 = por %p53, %p54
      %p56 = scmp.ne.s32.totalorder %s42, %s43
      %p57 = scmp.eq.s32.totalorder %s21, 1
      %p58 = por %p56, %p57
      %p60 = scmp.ne.s32.totalorder %s43, %s59
      %p61 = scmp.eq.s32.totalorder %s21, 0
      %p62 = por %p60, %p61
      %s64 = sadd.s32 %s63, 1
      %p67 = scmp.eq.s32.totalorder %s15, 1
      %p68 = scmp.ne.s32.totalorder %s63, %s65
      %p69 = scmp.eq.s32.totalorder %s15, 0
      %p70 = por %p68, %p69
      %p71 = scmp.ne.s32.totalorder %s63, %s65
      %p72 = scmp.eq.s32.totalorder %s20, 1
      %p73 = por %p71, %p72
      %p74 = scmp.ne.s32.totalorder %s65, %s66
      %p75 = scmp.eq.s32.totalorder %s20, 0
      %p76 = por %p74, %p75
      %p77 = scmp.ne.s32.totalorder %s65, %s66
      %p78 = scmp.eq.s32.totalorder %s21, 1
      %p79 = por %p77, %p78
      %p81 = scmp.ne.s32.totalorder %s66, %s80
      %p82 = scmp.eq.s32.totalorder %s21, 0
      %p83 = por %p81, %p82
      %s85 = sadd.s32 %s84, 1
      %p88 = scmp.eq.s32.totalorder %s15, 1
      %p89 = scmp.ne.s32.totalorder %s84, %s86
      %p90 = scmp.eq.s32.totalorder %s15, 0
      %p91 = por %p89, %p90
      %p92 = scmp.ne.s32.totalorder %s84, %s86
      %p93 = scmp.eq.s32.totalorder %s20, 1
      %p94 = por %p92, %p93
      %p95 = scmp.ne.s32.totalorder %s86, %s87
      %p96 = scmp.eq.s32.totalorder %s20, 0
      %p97 = por %p95, %p96
      %p98 = scmp.ne.s32.totalorder %s86, %s87
      %p99 = scmp.eq.s32.totalorder %s21, 1
      %p100 = por %p98, %p99
      %p102 = scmp.ne.s32.totalorder %s87, %s101
      %p103 = scmp.eq.s32.totalorder %s21, 0
      %p104 = por %p102, %p103
      %s105 = ssub.s32 %s22, %s34
      %s106 = ssub.s32 %s23, %s30
      %s107 = sor.u32 %s105, %s106
      %p108 = scmp.eq.s32.totalorder %s107, 0
      %s110 = sadd.s32 %s109, 1
      %s111 = scalar_select %p108, %s109, %s110
      %p114 = pneg %p108
      %p115 = scmp.eq.s32.totalorder %s15, 1
      %p116 = por %p114, %p115
      %p117 = scmp.ne.s32.totalorder %s109, %s112
      %p118 = scmp.eq.s32.totalorder %s15, 0
      %p119 = por %p117, %p118
      %p120 = scmp.ne.s32.totalorder %s109, %s112
      %p121 = scmp.eq.s32.totalorder %s20, 1
      %p122 = por %p120, %p121
      %p123 = scmp.ne.s32.totalorder %s112, %s113
      %p124 = scmp.eq.s32.totalorder %s20, 0
      %p125 = por %p123, %p124
      %p126 = scmp.ne.s32.totalorder %s112, %s113
      %p127 = scmp.eq.s32.totalorder %s21, 1
      %p128 = por %p126, %p127
      %p130 = scmp.ne.s32.totalorder %s113, %s129
      %p131 = scmp.eq.s32.totalorder %s21, 0
      %p132 = por %p130, %p131
      %p133 = scmp.le.s32.totalorder 1, %s15
      %p134 = scmp.lt.s32.totalorder %s15, 3
      %p135 = pnand %p133, %p134
      %p136 = pneg %p135
      // Predicated region
      $region9: #{tpu_custom_call.1} parent=5 // pred_check
        _
      $region10: #{tpu_custom_call.1} parent=5 // pred_check_branch
        %138 = sbr.rel (%p135) target = $region12
      $region11: #{tpu_custom_call.1} parent=5 // pred_region
        %s139 = ssub.s32 %s15, 1
        // Predicated region
        $region13: #{tpu_custom_call.1} parent=11 // pred_check
          %p140 = pneg %p76
        $region14: #{tpu_custom_call.1} parent=11 // pred_check_branch
          %142 = sbr.rel (%p140) target = $region16
        $region15: #{tpu_custom_call.1} parent=11 // pred_region
          _
        $region16: #{tpu_custom_call.1} parent=11 // pred_fallthru
          _
        // Predicated region
        $region17: #{tpu_custom_call.1} parent=11 // pred_check
          %p143 = pneg %p97
        $region18: #{tpu_custom_call.1} parent=11 // pred_check_branch
          %145 = sbr.rel (%p143) target = $region20
        $region19: #{tpu_custom_call.1} parent=11 // pred_region
          _
        $region20: #{tpu_custom_call.1} parent=11 // pred_fallthru
          _
      $region12: #{tpu_custom_call.1} parent=5 // pred_fallthru
        _
      %p146 = scmp.lt.s32.totalorder %s15, 2
      // Predicated region
      $region21: #{tpu_custom_call.1} parent=5 // pred_check
        %p147 = pneg %p146
      $region22: #{tpu_custom_call.1} parent=5 // pred_check_branch
        %149 = sbr.rel (%p147) target = $region24
      $region23: #{tpu_custom_call.1} parent=5 // pred_region
        // Predicated region
        $region25: #{tpu_custom_call.1} parent=23 // pred_check
          %p150 = pneg %p49
        $region26: #{tpu_custom_call.1} parent=23 // pred_check_branch
          %152 = sbr.rel (%p150) target = $region28
        $region27: #{tpu_custom_call.1} parent=23 // pred_region
          %s153 = sand.u32 %s39, 1
          %s154 = scalar_lea.sflag [#allocation3], %s153
          %s155 = sand.u32 %s39, 1
          %s156 = smul.addr %s155, 192
          %s157 = scalar_lea.vmem [#allocation2], %s156
          %s159 = ssub.s32 3072, 3072
          %160 = vsyncadd %s154, %s159
          %s161 = smul.addr %s22, 48
          %s162 = sadd.s32 %s23, %s161
          %s163 = smul.addr %s162, 64
          %s164 = scalar_lea.hbm %s0, %s163
          %s165 = sshll.u32 %s157, 4
          %s166 = int_to_ptr.vmem [resolvable:$true] %s165
          %171 = dma.hbm_to_vmem [thread:$0]  %s164, 3072, %s166, %s154, 64, 64, 4
        $region28: #{tpu_custom_call.1} parent=23 // pred_fallthru
          _
      $region24: #{tpu_custom_call.1} parent=5 // pred_fallthru
        _
      %p172 = scmp.le.s32.totalorder 1, %s15
      %p173 = scmp.lt.s32.totalorder %s15, 3
      %p174 = pnand %p172, %p173
      %p175 = pneg %p174
      // Predicated region
      $region29: #{tpu_custom_call.1} parent=5 // pred_check
        _
      $region30: #{tpu_custom_call.1} parent=5 // pred_check_branch
        %177 = sbr.rel (%p174) target = $region32
      $region31: #{tpu_custom_call.1} parent=5 // pred_region
        %s178 = ssub.s32 %s15, 1
        %s179 = sand.u32 %s42, 1
        %s180 = scalar_lea.sflag [#allocation3], %s179
        %s181 = sand.u32 %s42, 1
        %s182 = smul.addr %s181, 192
        %s183 = scalar_lea.vmem [#allocation2], %s182
        // Predicated region
        $region33: #{tpu_custom_call.1} parent=31 // pred_check
          %p184 = pneg %p55
        $region34: #{tpu_custom_call.1} parent=31 // pred_check_branch
          %186 = sbr.rel (%p184) target = $region36
        $region35: #{tpu_custom_call.1} parent=31 // pred_region
          %187 = dma.done %s180, 3072
        $region36: #{tpu_custom_call.1} parent=31 // pred_fallthru
          _
        %s188 = sand.u32 %s42, 1
        %s189 = scalar_lea.sflag [#allocation3], %s188
        %s190 = sand.u32 %s42, 1
        %s191 = smul.addr %s190, 192
        %s192 = scalar_lea.vmem [#allocation2], %s191
        %p193 = pneg %p55
        %p194 = pneg %p52
        %p195 = pneg %p76
        %p196 = pneg %p73
        %p197 = pneg %p97
        %p198 = pneg %p94
        %p199 = pneg %p125
        %p200 = pneg %p122
        %s201 = sand.u32 %s112, 1
        %s202 = scalar_lea.sflag [#allocation4], %s201
        %s203 = sand.u32 %s112, 1
        %s204 = smul.addr %s203, 192
        %s205 = scalar_lea.vmem [#allocation5], %s204
        %v207 = vld [vmem:[%s1] sm:$0xff]
        %v208 = vld [vmem:[%s1 + $0x8] sm:$0xff]
        %v209 = vld [vmem:[%s1 + $0x10] sm:$0xff]
        %v210 = vld [vmem:[%s2] sm:$0xff]
        %v211 = vld [vmem:[%s2 + $0x8] sm:$0xff]
        %v212 = vld [vmem:[%s2 + $0x10] sm:$0xff]
        %214 = vset.pattern.permute.xlu0 0
        %215 = vperm.xlu0 %214, %v210
        %v216 = vpop.permute.xlu0 %215
        %219 = vset.pattern.permute.xlu0 0
        %220 = vperm.xlu0 %219, %v211
        %v221 = vpop.permute.xlu0 %220
        %224 = vset.pattern.permute.xlu0 0
        %225 = vperm.xlu0 %224, %v212
        %v226 = vpop.permute.xlu0 %225
        %v228 = vld [vmem:[%s183] sm:$0xf]
        %v229 = vld [vmem:[%s183 + $0x4] sm:$0xf]
        %v230 = vld [vmem:[%s183 + $0x8] sm:$0xf]
        %v231 = vld [vmem:[%s183 + $0xc] sm:$0xf]
        %v232 = vld [vmem:[%s183 + $0x10] sm:$0xf]
        %v233 = vld [vmem:[%s183 + $0x14] sm:$0xf]
        %v234 = vld [vmem:[%s183 + $0x18] sm:$0xf]
        %v235 = vld [vmem:[%s183 + $0x1c] sm:$0xf]
        %v236 = vld [vmem:[%s183 + $0x20] sm:$0xf]
        %v237 = vld [vmem:[%s183 + $0x24] sm:$0xf]
        %v238 = vld [vmem:[%s183 + $0x28] sm:$0xf]
        %v239 = vld [vmem:[%s183 + $0x2c] sm:$0xf]
        %v240 = vld [vmem:[%s183 + $0x30] sm:$0xf]
        %v241 = vld [vmem:[%s183 + $0x34] sm:$0xf]
        %v242 = vld [vmem:[%s183 + $0x38] sm:$0xf]
        %v243 = vld [vmem:[%s183 + $0x3c] sm:$0xf]
        %v244 = vld [vmem:[%s183 + $0x40] sm:$0xf]
        %v245 = vld [vmem:[%s183 + $0x44] sm:$0xf]
        %v246 = vld [vmem:[%s183 + $0x48] sm:$0xf]
        %v247 = vld [vmem:[%s183 + $0x4c] sm:$0xf]
        %v251 = vunpack.c.l.b16 %v207
        %v252 = vunpack.c.h.b16 %v207
        %v253 = vunpack.c.l.b16 %v208
        %v254 = vunpack.c.h.b16 %v208
        %v255 = vunpack.c.l.b16 %v209
        %v256 = vunpack.c.h.b16 %v209
        %v257 = vpack.c.b16 %v253, %v251
        %v258 = vpack.c.b16 %v254, %v252
        %v259 = vpack.c.b16 %v255, %v255
        %v260 = vpack.c.b16 %v256, %v256
        %v283 = vunpack.c.l.b16 %v228
        %v284 = vunpack.c.l.b16 %v229
        %v285 = vunpack.c.l.b16 %v230
        %v286 = vunpack.c.l.b16 %v231
        %v287 = vunpack.c.l.b16 %v232
        %v288 = vunpack.c.l.b16 %v233
        %v289 = vunpack.c.l.b16 %v234
        %v290 = vunpack.c.l.b16 %v235
        %v291 = vunpack.c.l.b16 %v236
        %v292 = vunpack.c.l.b16 %v237
        %v293 = vunpack.c.l.b16 %v238
        %v294 = vunpack.c.l.b16 %v239
        %v295 = vunpack.c.l.b16 %v240
        %v296 = vunpack.c.l.b16 %v241
        %v297 = vunpack.c.l.b16 %v242
        %v298 = vunpack.c.l.b16 %v243
        %v299 = vunpack.c.l.b16 %v244
        %v300 = vunpack.c.l.b16 %v245
        %v301 = vunpack.c.l.b16 %v246
        %v302 = vunpack.c.l.b16 %v247
        %v303 = vpack.c.b16 %v284, %v283
        %v304 = vpack.c.b16 %v286, %v285
        %v305 = vpack.c.b16 %v288, %v287
        %v306 = vpack.c.b16 %v290, %v289
        %v307 = vpack.c.b16 %v292, %v291
        %v308 = vpack.c.b16 %v294, %v293
        %v309 = vpack.c.b16 %v296, %v295
        %v310 = vpack.c.b16 %v298, %v297
        %v311 = vpack.c.b16 %v300, %v299
        %v312 = vpack.c.b16 %v302, %v301
        %vm323 = vcmask 261120
        %v325 = vsel %vm323, %v258, 0
        %v328 = vsel %vm323, %v260, 0
        %330 = vmatprep.subr.bf16.mxu0 0
        %331 = vmatpush1.bf16.msra.mxu0 %v303
        %332 = vmatprep.subr.bf16.mxu0 0
        %333 = vmatpush1.bf16.msra.mxu0 %v304
        %334 = vmatprep.subr.bf16.mxu0 0
        %335 = vmatpush1.bf16.msra.mxu0 %v305
        %336 = vmatprep.subr.bf16.mxu0 0
        %337 = vmatpush1.bf16.msra.mxu0 %v306
        %338 = vmatprep.subr.bf16.mxu0 0
        %339 = vmatpush1.bf16.msra.mxu0 %v307
        %340 = vmatprep.subr.bf16.mxu0 0
        %341 = vmatpush1.bf16.msra.mxu0 %v308
        %342 = vmatprep.subr.bf16.mxu0 0
        %343 = vmatpush1.bf16.msra.mxu0 %v309
        %344 = vmatprep.subr.bf16.mxu0 0
        %345 = vmatpush1.bf16.msra.mxu0 %v310
        %346 = vmatprep.subr.bf16.mxu0 0
        %347 = vmatpush1.bf16.msra.mxu0 %v311
        %348 = vmatprep.subr.bf16.mxu0 0
        %349 = vmatpush1.bf16.msra.mxu0 %v312
        %350 = vmatprep.subr.bf16.mxu0 0
        %351 = vmatpush1.bf16.msra.mxu0 0
        %352 = vmatprep.subr.bf16.mxu0 0
        %353 = vmatpush1.bf16.msra.mxu0 0
        %354 = vmatprep.subr.bf16.mxu0 0
        %355 = vmatpush1.bf16.msra.mxu0 0
        %356 = vmatprep.subr.bf16.mxu0 0
        %357 = vmatpush1.bf16.msra.mxu0 0
        %358 = vmatprep.subr.bf16.mxu0 0
        %359 = vmatpush1.bf16.msra.mxu0 0
        %360 = vmatprep.subr.bf16.mxu0 0
        %361 = vmatpush1.bf16.msra.mxu0 0
        %362 = vmatprep.mubr.bf16.mxu0 %v325
        %363 = vmatmul.mubr.bf16.gmra.mrb[0].mxu0 %v257
        %v364 = vpop.f32.mrb[0].mxu0
        %v365 = vadd.f32 %v216, %v364
        %v366 = vpop.f32.mrb[0].mxu0
        %v367 = vpop.f32.mrb[0].mxu0
        %v368 = vadd.f32 %v221, %v367
        %v369 = vpop.f32.mrb[0].mxu0
        %370 = vmatprep.mubr.bf16.mxu0 %v328
        %371 = vmatmul.mubr.bf16.gmra.mrb[0].mxu0 %v259
        %v372 = vpop.f32.mrb[0].mxu0
        %v373 = vadd.f32 %v226, %v372
        %v374 = vpop.f32.mrb[0].mxu0
        %v375 = vpop.f32.mrb[0].mxu0
        %v376 = vpop.f32.mrb[0].mxu0
        %377 = vdwg.mxu0
        %v378 = vmax.f32 %v365, 0.0
        %v379 = vmax.f32 %v368, 0.0
        %v380 = vmax.f32 %v373, 0.0
        %381 = vst [vmem:[%s205] sm:$0xff] %v378
        %382 = vst [vmem:[%s205 + $0x8] sm:$0xff] %v379
        %383 = vst [vmem:[%s205 + $0x10] sm:$0xff] %v380
        %v384 = vld [vmem:[%s183 + $0x10] sm:$0xf]
        %v385 = vld [vmem:[%s183 + $0x14] sm:$0xf]
        %v386 = vld [vmem:[%s183 + $0x18] sm:$0xf]
        %v387 = vld [vmem:[%s183 + $0x1c] sm:$0xf]
        %v388 = vld [vmem:[%s183 + $0x20] sm:$0xf]
        %v389 = vld [vmem:[%s183 + $0x24] sm:$0xf]
        %v390 = vld [vmem:[%s183 + $0x28] sm:$0xf]
        %v391 = vld [vmem:[%s183 + $0x2c] sm:$0xf]
        %v392 = vld [vmem:[%s183 + $0x30] sm:$0xf]
        %v393 = vld [vmem:[%s183 + $0x34] sm:$0xf]
        %v394 = vld [vmem:[%s183 + $0x38] sm:$0xf]
        %v395 = vld [vmem:[%s183 + $0x3c] sm:$0xf]
        %v396 = vld [vmem:[%s183 + $0x40] sm:$0xf]
        %v397 = vld [vmem:[%s183 + $0x44] sm:$0xf]
        %v398 = vld [vmem:[%s183 + $0x48] sm:$0xf]
        %v399 = vld [vmem:[%s183 + $0x4c] sm:$0xf]
        %v400 = vld [vmem:[%s183 + $0x50] sm:$0xf]
        %v401 = vld [vmem:[%s183 + $0x54] sm:$0xf]
        %v402 = vld [vmem:[%s183 + $0x58] sm:$0xf]
        %v403 = vld [vmem:[%s183 + $0x5c] sm:$0xf]
        %v424 = vunpack.c.l.b16 %v384
        %v425 = vunpack.c.l.b16 %v385
        %v426 = vunpack.c.l.b16 %v386
        %v427 = vunpack.c.l.b16 %v387
        %v428 = vunpack.c.l.b16 %v388
        %v429 = vunpack.c.l.b16 %v389
        %v430 = vunpack.c.l.b16 %v390
        %v431 = vunpack.c.l.b16 %v391
        %v432 = vunpack.c.l.b16 %v392
        %v433 = vunpack.c.l.b16 %v393
        %v434 = vunpack.c.l.b16 %v394
        %v435 = vunpack.c.l.b16 %v395
        %v436 = vunpack.c.l.b16 %v396
        %v437 = vunpack.c.l.b16 %v397
        %v438 = vunpack.c.l.b16 %v398
        %v439 = vunpack.c.l.b16 %v399
        %v440 = vunpack.c.l.b16 %v400
        %v441 = vunpack.c.l.b16 %v401
        %v442 = vunpack.c.l.b16 %v402
        %v443 = vunpack.c.l.b16 %v403
        %v444 = vpack.c.b16 %v425, %v424
        %v445 = vpack.c.b16 %v427, %v426
        %v446 = vpack.c.b16 %v429, %v428
        %v447 = vpack.c.b16 %v431, %v430
        %v448 = vpack.c.b16 %v433, %v432
        %v449 = vpack.c.b16 %v435, %v434
        %v450 = vpack.c.b16 %v437, %v436
        %v451 = vpack.c.b16 %v439, %v438
        %v452 = vpack.c.b16 %v441, %v440
        %v453 = vpack.c.b16 %v443, %v442
        %464 = vmatprep.subr.bf16.mxu0 0
        %465 = vmatpush1.bf16.msra.mxu0 %v444
        %466 = vmatprep.subr.bf16.mxu0 0
        %467 = vmatpush1.bf16.msra.mxu0 %v445
        %468 = vmatprep.subr.bf16.mxu0 0
        %469 = vmatpush1.bf16.msra.mxu0 %v446
        %470 = vmatprep.subr.bf16.mxu0 0
        %471 = vmatpush1.bf16.msra.mxu0 %v447
        %472 = vmatprep.subr.bf16.mxu0 0
        %473 = vmatpush1.bf16.msra.mxu0 %v448
        %474 = vmatprep.subr.bf16.mxu0 0
        %475 = vmatpush1.bf16.msra.mxu0 %v449
        %476 = vmatprep.subr.bf16.mxu0 0
        %477 = vmatpush1.bf16.msra.mxu0 %v450
        %478 = vmatprep.subr.bf16.mxu0 0
        %479 = vmatpush1.bf16.msra.mxu0 %v451
        %480 = vmatprep.subr.bf16.mxu0 0
        %481 = vmatpush1.bf16.msra.mxu0 %v452
        %482 = vmatprep.subr.bf16.mxu0 0
        %483 = vmatpush1.bf16.msra.mxu0 %v453
        %484 = vmatprep.subr.bf16.mxu0 0
        %485 = vmatpush1.bf16.msra.mxu0 0
        %486 = vmatprep.subr.bf16.mxu0 0
        %487 = vmatpush1.bf16.msra.mxu0 0
        %488 = vmatprep.subr.bf16.mxu0 0
        %489 = vmatpush1.bf16.msra.mxu0 0
        %490 = vmatprep.subr.bf16.mxu0 0
        %491 = vmatpush1.bf16.msra.mxu0 0
        %492 = vmatprep.subr.bf16.mxu0 0
        %493 = vmatpush1.bf16.msra.mxu0 0
        %494 = vmatprep.subr.bf16.mxu0 0
        %495 = vmatpush1.bf16.msra.mxu0 0
        %496 = vmatprep.mubr.bf16.mxu0 %v325
        %497 = vmatmul.mubr.bf16.gmra.mrb[0].mxu0 %v257
        %v498 = vpop.f32.mrb[0].mxu0
        %v499 = vadd.f32 %v216, %v498
        %v500 = vpop.f32.mrb[0].mxu0
        %v501 = vpop.f32.mrb[0].mxu0
        %v502 = vadd.f32 %v221, %v501
        %v503 = vpop.f32.mrb[0].mxu0
        %504 = vmatprep.mubr.bf16.mxu0 %v328
        %505 = vmatmul.mubr.bf16.gmra.mrb[0].mxu0 %v259
        %v506 = vpop.f32.mrb[0].mxu0
        %v507 = vadd.f32 %v226, %v506
        %v508 = vpop.f32.mrb[0].mxu0
        %v509 = vpop.f32.mrb[0].mxu0
        %v510 = vpop.f32.mrb[0].mxu0
        %511 = vdwg.mxu0
        %v512 = vmax.f32 %v499, 0.0
        %v513 = vmax.f32 %v502, 0.0
        %v514 = vmax.f32 %v507, 0.0
        %s515 = scalar_lea.vmem %s205, 24 [#allocation5]
        %516 = vst [vmem:[%s515] sm:$0xff] %v512
        %517 = vst [vmem:[%s515 + $0x8] sm:$0xff] %v513
        %518 = vst [vmem:[%s515 + $0x10] sm:$0xff] %v514
        %v519 = vld [vmem:[%s183 + $0x20] sm:$0xf]
        %v520 = vld [vmem:[%s183 + $0x24] sm:$0xf]
        %v521 = vld [vmem:[%s183 + $0x28] sm:$0xf]
        %v522 = vld [vmem:[%s183 + $0x2c] sm:$0xf]
        %v523 = vld [vmem:[%s183 + $0x30] sm:$0xf]
        %v524 = vld [vmem:[%s183 + $0x34] sm:$0xf]
        %v525 = vld [vmem:[%s183 + $0x38] sm:$0xf]
        %v526 = vld [vmem:[%s183 + $0x3c] sm:$0xf]
        %v527 = vld [vmem:[%s183 + $0x40] sm:$0xf]
        %v528 = vld [vmem:[%s183 + $0x44] sm:$0xf]
        %v529 = vld [vmem:[%s183 + $0x48] sm:$0xf]
        %v530 = vld [vmem:[%s183 + $0x4c] sm:$0xf]
        %v531 = vld [vmem:[%s183 + $0x50] sm:$0xf]
        %v532 = vld [vmem:[%s183 + $0x54] sm:$0xf]
        %v533 = vld [vmem:[%s183 + $0x58] sm:$0xf]
        %v534 = vld [vmem:[%s183 + $0x5c] sm:$0xf]
        %v535 = vld [vmem:[%s183 + $0x60] sm:$0xf]
        %v536 = vld [vmem:[%s183 + $0x64] sm:$0xf]
        %v537 = vld [vmem:[%s183 + $0x68] sm:$0xf]
        %v538 = vld [vmem:[%s183 + $0x6c] sm:$0xf]
        %v559 = vunpack.c.l.b16 %v519
        %v560 = vunpack.c.l.b16 %v520
        %v561 = vunpack.c.l.b16 %v521
        %v562 = vunpack.c.l.b16 %v522
        %v563 = vunpack.c.l.b16 %v523
        %v564 = vunpack.c.l.b16 %v524
        %v565 = vunpack.c.l.b16 %v525
        %v566 = vunpack.c.l.b16 %v526
        %v567 = vunpack.c.l.b16 %v527
        %v568 = vunpack.c.l.b16 %v528
        %v569 = vunpack.c.l.b16 %v529
        %v570 = vunpack.c.l.b16 %v530
        %v571 = vunpack.c.l.b16 %v531
        %v572 = vunpack.c.l.b16 %v532
        %v573 = vunpack.c.l.b16 %v533
        %v574 = vunpack.c.l.b16 %v534
        %v575 = vunpack.c.l.b16 %v535
        %v576 = vunpack.c.l.b16 %v536
        %v577 = vunpack.c.l.b16 %v537
        %v578 = vunpack.c.l.b16 %v538
        %v579 = vpack.c.b16 %v560, %v559
        %v580 = vpack.c.b16 %v562, %v561
        %v581 = vpack.c.b16 %v564, %v563
        %v582 = vpack.c.b16 %v566, %v565
        %v583 = vpack.c.b16 %v568, %v567
        %v584 = vpack.c.b16 %v570, %v569
        %v585 = vpack.c.b16 %v572, %v571
        %v586 = vpack.c.b16 %v574, %v573
        %v587 = vpack.c.b16 %v576, %v575
        %v588 = vpack.c.b16 %v578, %v577
        %599 = vmatprep.subr.bf16.mxu0 0
        %600 = vmatpush1.bf16.msra.mxu0 %v579
        %601 = vmatprep.subr.bf16.mxu0 0
        %602 = vmatpush1.bf16.msra.mxu0 %v580
        %603 = vmatprep.subr.bf16.mxu0 0
        %604 = vmatpush1.bf16.msra.mxu0 %v581
        %605 = vmatprep.subr.bf16.mxu0 0
        %606 = vmatpush1.bf16.msra.mxu0 %v582
        %607 = vmatprep.subr.bf16.mxu0 0
        %608 = vmatpush1.bf16.msra.mxu0 %v583
        %609 = vmatprep.subr.bf16.mxu0 0
        %610 = vmatpush1.bf16.msra.mxu0 %v584
        %611 = vmatprep.subr.bf16.mxu0 0
        %612 = vmatpush1.bf16.msra.mxu0 %v585
        %613 = vmatprep.subr.bf16.mxu0 0
        %614 = vmatpush1.bf16.msra.mxu0 %v586
        %615 = vmatprep.subr.bf16.mxu0 0
        %616 = vmatpush1.bf16.msra.mxu0 %v587
        %617 = vmatprep.subr.bf16.mxu0 0
        %618 = vmatpush1.bf16.msra.mxu0 %v588
        %619 = vmatprep.subr.bf16.mxu0 0
        %620 = vmatpush1.bf16.msra.mxu0 0
        %621 = vmatprep.subr.bf16.mxu0 0
        %622 = vmatpush1.bf16.msra.mxu0 0
        %623 = vmatprep.subr.bf16.mxu0 0
        %624 = vmatpush1.bf16.msra.mxu0 0
        %625 = vmatprep.subr.bf16.mxu0 0
        %626 = vmatpush1.bf16.msra.mxu0 0
        %627 = vmatprep.subr.bf16.mxu0 0
        %628 = vmatpush1.bf16.msra.mxu0 0
        %629 = vmatprep.subr.bf16.mxu0 0
        %630 = vmatpush1.bf16.msra.mxu0 0
        %631 = vmatprep.mubr.bf16.mxu0 %v325
        %632 = vmatmul.mubr.bf16.gmra.mrb[0].mxu0 %v257
        %v633 = vpop.f32.mrb[0].mxu0
        %v634 = vadd.f32 %v216, %v633
        %v635 = vpop.f32.mrb[0].mxu0
        %v636 = vpop.f32.mrb[0].mxu0
        %v637 = vadd.f32 %v221, %v636
        %v638 = vpop.f32.mrb[0].mxu0
        %639 = vmatprep.mubr.bf16.mxu0 %v328
        %640 = vmatmul.mubr.bf16.gmra.mrb[0].mxu0 %v259
        %v641 = vpop.f32.mrb[0].mxu0
        %v642 = vadd.f32 %v226, %v641
        %v643 = vpop.f32.mrb[0].mxu0
        %v644 = vpop.f32.mrb[0].mxu0
        %v645 = vpop.f32.mrb[0].mxu0
        %646 = vdwg.mxu0
        %v647 = vmax.f32 %v634, 0.0
        %v648 = vmax.f32 %v637, 0.0
        %v649 = vmax.f32 %v642, 0.0
        %s650 = scalar_lea.vmem %s205, 48 [#allocation5]
        %651 = vst [vmem:[%s650] sm:$0xff] %v647
        %652 = vst [vmem:[%s650 + $0x8] sm:$0xff] %v648
        %653 = vst [vmem:[%s650 + $0x10] sm:$0xff] %v649
        %v654 = vld [vmem:[%s183 + $0x30] sm:$0xf]
        %v655 = vld [vmem:[%s183 + $0x34] sm:$0xf]
        %v656 = vld [vmem:[%s183 + $0x38] sm:$0xf]
        %v657 = vld [vmem:[%s183 + $0x3c] sm:$0xf]
        %v658 = vld [vmem:[%s183 + $0x40] sm:$0xf]
        %v659 = vld [vmem:[%s183 + $0x44] sm:$0xf]
        %v660 = vld [vmem:[%s183 + $0x48] sm:$0xf]
        %v661 = vld [vmem:[%s183 + $0x4c] sm:$0xf]
        %v662 = vld [vmem:[%s183 + $0x50] sm:$0xf]
        %v663 = vld [vmem:[%s183 + $0x54] sm:$0xf]
        %v664 = vld [vmem:[%s183 + $0x58] sm:$0xf]
        %v665 = vld [vmem:[%s183 + $0x5c] sm:$0xf]
        %v666 = vld [vmem:[%s183 + $0x60] sm:$0xf]
        %v667 = vld [vmem:[%s183 + $0x64] sm:$0xf]
        %v668 = vld [vmem:[%s183 + $0x68] sm:$0xf]
        %v669 = vld [vmem:[%s183 + $0x6c] sm:$0xf]
        %v670 = vld [vmem:[%s183 + $0x70] sm:$0xf]
        %v671 = vld [vmem:[%s183 + $0x74] sm:$0xf]
        %v672 = vld [vmem:[%s183 + $0x78] sm:$0xf]
        %v673 = vld [vmem:[%s183 + $0x7c] sm:$0xf]
        %v694 = vunpack.c.l.b16 %v654
        %v695 = vunpack.c.l.b16 %v655
        %v696 = vunpack.c.l.b16 %v656
        %v697 = vunpack.c.l.b16 %v657
        %v698 = vunpack.c.l.b16 %v658
        %v699 = vunpack.c.l.b16 %v659
        %v700 = vunpack.c.l.b16 %v660
        %v701 = vunpack.c.l.b16 %v661
        %v702 = vunpack.c.l.b16 %v662
        %v703 = vunpack.c.l.b16 %v663
        %v704 = vunpack.c.l.b16 %v664
        %v705 = vunpack.c.l.b16 %v665
        %v706 = vunpack.c.l.b16 %v666
        %v707 = vunpack.c.l.b16 %v667
        %v708 = vunpack.c.l.b16 %v668
        %v709 = vunpack.c.l.b16 %v669
        %v710 = vunpack.c.l.b16 %v670
        %v711 = vunpack.c.l.b16 %v671
        %v712 = vunpack.c.l.b16 %v672
        %v713 = vunpack.c.l.b16 %v673
        %v714 = vpack.c.b16 %v695, %v694
        %v715 = vpack.c.b16 %v697, %v696
        %v716 = vpack.c.b16 %v699, %v698
        %v717 = vpack.c.b16 %v701, %v700
        %v718 = vpack.c.b16 %v703, %v702
        %v719 = vpack.c.b16 %v705, %v704
        %v720 = vpack.c.b16 %v707, %v706
        %v721 = vpack.c.b16 %v709, %v708
        %v722 = vpack.c.b16 %v711, %v710
        %v723 = vpack.c.b16 %v713, %v712
        %734 = vmatprep.subr.bf16.mxu0 0
        %735 = vmatpush1.bf16.msra.mxu0 %v714
        %736 = vmatprep.subr.bf16.mxu0 0
        %737 = vmatpush1.bf16.msra.mxu0 %v715
        %738 = vmatprep.subr.bf16.mxu0 0
        %739 = vmatpush1.bf16.msra.mxu0 %v716
        %740 = vmatprep.subr.bf16.mxu0 0
        %741 = vmatpush1.bf16.msra.mxu0 %v717
        %742 = vmatprep.subr.bf16.mxu0 0
        %743 = vmatpush1.bf16.msra.mxu0 %v718
        %744 = vmatprep.subr.bf16.mxu0 0
        %745 = vmatpush1.bf16.msra.mxu0 %v719
        %746 = vmatprep.subr.bf16.mxu0 0
        %747 = vmatpush1.bf16.msra.mxu0 %v720
        %748 = vmatprep.subr.bf16.mxu0 0
        %749 = vmatpush1.bf16.msra.mxu0 %v721
        %750 = vmatprep.subr.bf16.mxu0 0
        %751 = vmatpush1.bf16.msra.mxu0 %v722
        %752 = vmatprep.subr.bf16.mxu0 0
        %753 = vmatpush1.bf16.msra.mxu0 %v723
        %754 = vmatprep.subr.bf16.mxu0 0
        %755 = vmatpush1.bf16.msra.mxu0 0
        %756 = vmatprep.subr.bf16.mxu0 0
        %757 = vmatpush1.bf16.msra.mxu0 0
        %758 = vmatprep.subr.bf16.mxu0 0
        %759 = vmatpush1.bf16.msra.mxu0 0
        %760 = vmatprep.subr.bf16.mxu0 0
        %761 = vmatpush1.bf16.msra.mxu0 0
        %762 = vmatprep.subr.bf16.mxu0 0
        %763 = vmatpush1.bf16.msra.mxu0 0
        %764 = vmatprep.subr.bf16.mxu0 0
        %765 = vmatpush1.bf16.msra.mxu0 0
        %766 = vmatprep.mubr.bf16.mxu0 %v325
        %767 = vmatmul.mubr.bf16.gmra.mrb[0].mxu0 %v257
        %v768 = vpop.f32.mrb[0].mxu0
        %v769 = vadd.f32 %v216, %v768
        %v770 = vpop.f32.mrb[0].mxu0
        %v771 = vpop.f32.mrb[0].mxu0
        %v772 = vadd.f32 %v221, %v771
        %v773 = vpop.f32.mrb[0].mxu0
        %774 = vmatprep.mubr.bf16.mxu0 %v328
        %775 = vmatmul.mubr.bf16.gmra.mrb[0].mxu0 %v259
        %v776 = vpop.f32.mrb[0].mxu0
        %v777 = vadd.f32 %v226, %v776
        %v778 = vpop.f32.mrb[0].mxu0
        %v779 = vpop.f32.mrb[0].mxu0
        %v780 = vpop.f32.mrb[0].mxu0
        %781 = vdwg.mxu0
        %v782 = vmax.f32 %v769, 0.0
        %v783 = vmax.f32 %v772, 0.0
        %v784 = vmax.f32 %v777, 0.0
        %s785 = scalar_lea.vmem %s205, 72 [#allocation5]
        %786 = vst [vmem:[%s785] sm:$0xff] %v782
        %787 = vst [vmem:[%s785 + $0x8] sm:$0xff] %v783
        %788 = vst [vmem:[%s785 + $0x10] sm:$0xff] %v784
        %v789 = vld [vmem:[%s183 + $0x40] sm:$0xf]
        %v790 = vld [vmem:[%s183 + $0x44] sm:$0xf]
        %v791 = vld [vmem:[%s183 + $0x48] sm:$0xf]
        %v792 = vld [vmem:[%s183 + $0x4c] sm:$0xf]
        %v793 = vld [vmem:[%s183 + $0x50] sm:$0xf]
        %v794 = vld [vmem:[%s183 + $0x54] sm:$0xf]
        %v795 = vld [vmem:[%s183 + $0x58] sm:$0xf]
        %v796 = vld [vmem:[%s183 + $0x5c] sm:$0xf]
        %v797 = vld [vmem:[%s183 + $0x60] sm:$0xf]
        %v798 = vld [vmem:[%s183 + $0x64] sm:$0xf]
        %v799 = vld [vmem:[%s183 + $0x68] sm:$0xf]
        %v800 = vld [vmem:[%s183 + $0x6c] sm:$0xf]
        %v801 = vld [vmem:[%s183 + $0x70] sm:$0xf]
        %v802 = vld [vmem:[%s183 + $0x74] sm:$0xf]
        %v803 = vld [vmem:[%s183 + $0x78] sm:$0xf]
        %v804 = vld [vmem:[%s183 + $0x7c] sm:$0xf]
        %v805 = vld [vmem:[%s183 + $0x80] sm:$0xf]
        %v806 = vld [vmem:[%s183 + $0x84] sm:$0xf]
        %v807 = vld [vmem:[%s183 + $0x88] sm:$0xf]
        %v808 = vld [vmem:[%s183 + $0x8c] sm:$0xf]
        %v829 = vunpack.c.l.b16 %v789
        %v830 = vunpack.c.l.b16 %v790
        %v831 = vunpack.c.l.b16 %v791
        %v832 = vunpack.c.l.b16 %v792
        %v833 = vunpack.c.l.b16 %v793
        %v834 = vunpack.c.l.b16 %v794
        %v835 = vunpack.c.l.b16 %v795
        %v836 = vunpack.c.l.b16 %v796
        %v837 = vunpack.c.l.b16 %v797
        %v838 = vunpack.c.l.b16 %v798
        %v839 = vunpack.c.l.b16 %v799
        %v840 = vunpack.c.l.b16 %v800
        %v841 = vunpack.c.l.b16 %v801
        %v842 = vunpack.c.l.b16 %v802
        %v843 = vunpack.c.l.b16 %v803
        %v844 = vunpack.c.l.b16 %v804
        %v845 = vunpack.c.l.b16 %v805
        %v846 = vunpack.c.l.b16 %v806
        %v847 = vunpack.c.l.b16 %v807
        %v848 = vunpack.c.l.b16 %v808
        %v849 = vpack.c.b16 %v830, %v829
        %v850 = vpack.c.b16 %v832, %v831
        %v851 = vpack.c.b16 %v834, %v833
        %v852 = vpack.c.b16 %v836, %v835
        %v853 = vpack.c.b16 %v838, %v837
        %v854 = vpack.c.b16 %v840, %v839
        %v855 = vpack.c.b16 %v842, %v841
        %v856 = vpack.c.b16 %v844, %v843
        %v857 = vpack.c.b16 %v846, %v845
        %v858 = vpack.c.b16 %v848, %v847
        %869 = vmatprep.subr.bf16.mxu0 0
        %870 = vmatpush1.bf16.msra.mxu0 %v849
        %871 = vmatprep.subr.bf16.mxu0 0
        %872 = vmatpush1.bf16.msra.mxu0 %v850
        %873 = vmatprep.subr.bf16.mxu0 0
        %874 = vmatpush1.bf16.msra.mxu0 %v851
        %875 = vmatprep.subr.bf16.mxu0 0
        %876 = vmatpush1.bf16.msra.mxu0 %v852
        %877 = vmatprep.subr.bf16.mxu0 0
        %878 = vmatpush1.bf16.msra.mxu0 %v853
        %879 = vmatprep.subr.bf16.mxu0 0
        %880 = vmatpush1.bf16.msra.mxu0 %v854
        %881 = vmatprep.subr.bf16.mxu0 0
        %882 = vmatpush1.bf16.msra.mxu0 %v855
        %883 = vmatprep.subr.bf16.mxu0 0
        %884 = vmatpush1.bf16.msra.mxu0 %v856
        %885 = vmatprep.subr.bf16.mxu0 0
        %886 = vmatpush1.bf16.msra.mxu0 %v857
        %887 = vmatprep.subr.bf16.mxu0 0
        %888 = vmatpush1.bf16.msra.mxu0 %v858
        %889 = vmatprep.subr.bf16.mxu0 0
        %890 = vmatpush1.bf16.msra.mxu0 0
        %891 = vmatprep.subr.bf16.mxu0 0
        %892 = vmatpush1.bf16.msra.mxu0 0
        %893 = vmatprep.subr.bf16.mxu0 0
        %894 = vmatpush1.bf16.msra.mxu0 0
        %895 = vmatprep.subr.bf16.mxu0 0
        %896 = vmatpush1.bf16.msra.mxu0 0
        %897 = vmatprep.subr.bf16.mxu0 0
        %898 = vmatpush1.bf16.msra.mxu0 0
        %899 = vmatprep.subr.bf16.mxu0 0
        %900 = vmatpush1.bf16.msra.mxu0 0
        %901 = vmatprep.mubr.bf16.mxu0 %v325
        %902 = vmatmul.mubr.bf16.gmra.mrb[0].mxu0 %v257
        %v903 = vpop.f32.mrb[0].mxu0
        %v904 = vadd.f32 %v216, %v903
        %v905 = vpop.f32.mrb[0].mxu0
        %v906 = vpop.f32.mrb[0].mxu0
        %v907 = vadd.f32 %v221, %v906
        %v908 = vpop.f32.mrb[0].mxu0
        %909 = vmatprep.mubr.bf16.mxu0 %v328
        %910 = vmatmul.mubr.bf16.gmra.mrb[0].mxu0 %v259
        %v911 = vpop.f32.mrb[0].mxu0
        %v912 = vadd.f32 %v226, %v911
        %v913 = vpop.f32.mrb[0].mxu0
        %v914 = vpop.f32.mrb[0].mxu0
        %v915 = vpop.f32.mrb[0].mxu0
        %916 = vdwg.mxu0
        %v917 = vmax.f32 %v904, 0.0
        %v918 = vmax.f32 %v907, 0.0
        %v919 = vmax.f32 %v912, 0.0
        %s920 = scalar_lea.vmem %s205, 96 [#allocation5]
        %921 = vst [vmem:[%s920] sm:$0xff] %v917
        %922 = vst [vmem:[%s920 + $0x8] sm:$0xff] %v918
        %923 = vst [vmem:[%s920 + $0x10] sm:$0xff] %v919
        %v924 = vld [vmem:[%s183 + $0x50] sm:$0xf]
        %v925 = vld [vmem:[%s183 + $0x54] sm:$0xf]
        %v926 = vld [vmem:[%s183 + $0x58] sm:$0xf]
        %v927 = vld [vmem:[%s183 + $0x5c] sm:$0xf]
        %v928 = vld [vmem:[%s183 + $0x60] sm:$0xf]
        %v929 = vld [vmem:[%s183 + $0x64] sm:$0xf]
        %v930 = vld [vmem:[%s183 + $0x68] sm:$0xf]
        %v931 = vld [vmem:[%s183 + $0x6c] sm:$0xf]
        %v932 = vld [vmem:[%s183 + $0x70] sm:$0xf]
        %v933 = vld [vmem:[%s183 + $0x74] sm:$0xf]
        %v934 = vld [vmem:[%s183 + $0x78] sm:$0xf]
        %v935 = vld [vmem:[%s183 + $0x7c] sm:$0xf]
        %v936 = vld [vmem:[%s183 + $0x80] sm:$0xf]
        %v937 = vld [vmem:[%s183 + $0x84] sm:$0xf]
        %v938 = vld [vmem:[%s183 + $0x88] sm:$0xf]
        %v939 = vld [vmem:[%s183 + $0x8c] sm:$0xf]
        %v940 = vld [vmem:[%s183 + $0x90] sm:$0xf]
        %v941 = vld [vmem:[%s183 + $0x94] sm:$0xf]
        %v942 = vld [vmem:[%s183 + $0x98] sm:$0xf]
        %v943 = vld [vmem:[%s183 + $0x9c] sm:$0xf]
        %v964 = vunpack.c.l.b16 %v924
        %v965 = vunpack.c.l.b16 %v925
        %v966 = vunpack.c.l.b16 %v926
        %v967 = vunpack.c.l.b16 %v927
        %v968 = vunpack.c.l.b16 %v928
        %v969 = vunpack.c.l.b16 %v929
        %v970 = vunpack.c.l.b16 %v930
        %v971 = vunpack.c.l.b16 %v931
        %v972 = vunpack.c.l.b16 %v932
        %v973 = vunpack.c.l.b16 %v933
        %v974 = vunpack.c.l.b16 %v934
        %v975 = vunpack.c.l.b16 %v935
        %v976 = vunpack.c.l.b16 %v936
        %v977 = vunpack.c.l.b16 %v937
        %v978 = vunpack.c.l.b16 %v938
        %v979 = vunpack.c.l.b16 %v939
        %v980 = vunpack.c.l.b16 %v940
        %v981 = vunpack.c.l.b16 %v941
        %v982 = vunpack.c.l.b16 %v942
        %v983 = vunpack.c.l.b16 %v943
        %v984 = vpack.c.b16 %v965, %v964
        %v985 = vpack.c.b16 %v967, %v966
        %v986 = vpack.c.b16 %v969, %v968
        %v987 = vpack.c.b16 %v971, %v970
        %v988 = vpack.c.b16 %v973, %v972
        %v989 = vpack.c.b16 %v975, %v974
        %v990 = vpack.c.b16 %v977, %v976
        %v991 = vpack.c.b16 %v979, %v978
        %v992 = vpack.c.b16 %v981, %v980
        %v993 = vpack.c.b16 %v983, %v982
        %1004 = vmatprep.subr.bf16.mxu0 0
        %1005 = vmatpush1.bf16.msra.mxu0 %v984
        %1006 = vmatprep.subr.bf16.mxu0 0
        %1007 = vmatpush1.bf16.msra.mxu0 %v985
        %1008 = vmatprep.subr.bf16.mxu0 0
        %1009 = vmatpush1.bf16.msra.mxu0 %v986
        %1010 = vmatprep.subr.bf16.mxu0 0
        %1011 = vmatpush1.bf16.msra.mxu0 %v987
        %1012 = vmatprep.subr.bf16.mxu0 0
        %1013 = vmatpush1.bf16.msra.mxu0 %v988
        %1014 = vmatprep.subr.bf16.mxu0 0
        %1015 = vmatpush1.bf16.msra.mxu0 %v989
        %1016 = vmatprep.subr.bf16.mxu0 0
        %1017 = vmatpush1.bf16.msra.mxu0 %v990
        %1018 = vmatprep.subr.bf16.mxu0 0
        %1019 = vmatpush1.bf16.msra.mxu0 %v991
        %1020 = vmatprep.subr.bf16.mxu0 0
        %1021 = vmatpush1.bf16.msra.mxu0 %v992
        %1022 = vmatprep.subr.bf16.mxu0 0
        %1023 = vmatpush1.bf16.msra.mxu0 %v993
        %1024 = vmatprep.subr.bf16.mxu0 0
        %1025 = vmatpush1.bf16.msra.mxu0 0
        %1026 = vmatprep.subr.bf16.mxu0 0
        %1027 = vmatpush1.bf16.msra.mxu0 0
        %1028 = vmatprep.subr.bf16.mxu0 0
        %1029 = vmatpush1.bf16.msra.mxu0 0
        %1030 = vmatprep.subr.bf16.mxu0 0
        %1031 = vmatpush1.bf16.msra.mxu0 0
        %1032 = vmatprep.subr.bf16.mxu0 0
        %1033 = vmatpush1.bf16.msra.mxu0 0
        %1034 = vmatprep.subr.bf16.mxu0 0
        %1035 = vmatpush1.bf16.msra.mxu0 0
        %1036 = vmatprep.mubr.bf16.mxu0 %v325
        %1037 = vmatmul.mubr.bf16.gmra.mrb[0].mxu0 %v257
        %v1038 = vpop.f32.mrb[0].mxu0
        %v1039 = vadd.f32 %v216, %v1038
        %v1040 = vpop.f32.mrb[0].mxu0
        %v1041 = vpop.f32.mrb[0].mxu0
        %v1042 = vadd.f32 %v221, %v1041
        %v1043 = vpop.f32.mrb[0].mxu0
        %1044 = vmatprep.mubr.bf16.mxu0 %v328
        %1045 = vmatmul.mubr.bf16.gmra.mrb[0].mxu0 %v259
        %v1046 = vpop.f32.mrb[0].mxu0
        %v1047 = vadd.f32 %v226, %v1046
        %v1048 = vpop.f32.mrb[0].mxu0
        %v1049 = vpop.f32.mrb[0].mxu0
        %v1050 = vpop.f32.mrb[0].mxu0
        %1051 = vdwg.mxu0
        %v1052 = vmax.f32 %v1039, 0.0
        %v1053 = vmax.f32 %v1042, 0.0
        %v1054 = vmax.f32 %v1047, 0.0
        %s1055 = scalar_lea.vmem %s205, 120 [#allocation5]
        %1056 = vst [vmem:[%s1055] sm:$0xff] %v1052
        %1057 = vst [vmem:[%s1055 + $0x8] sm:$0xff] %v1053
        %1058 = vst [vmem:[%s1055 + $0x10] sm:$0xff] %v1054
        %v1059 = vld [vmem:[%s183 + $0x60] sm:$0xf]
        %v1060 = vld [vmem:[%s183 + $0x64] sm:$0xf]
        %v1061 = vld [vmem:[%s183 + $0x68] sm:$0xf]
        %v1062 = vld [vmem:[%s183 + $0x6c] sm:$0xf]
        %v1063 = vld [vmem:[%s183 + $0x70] sm:$0xf]
        %v1064 = vld [vmem:[%s183 + $0x74] sm:$0xf]
        %v1065 = vld [vmem:[%s183 + $0x78] sm:$0xf]
        %v1066 = vld [vmem:[%s183 + $0x7c] sm:$0xf]
        %v1067 = vld [vmem:[%s183 + $0x80] sm:$0xf]
        %v1068 = vld [vmem:[%s183 + $0x84] sm:$0xf]
        %v1069 = vld [vmem:[%s183 + $0x88] sm:$0xf]
        %v1070 = vld [vmem:[%s183 + $0x8c] sm:$0xf]
        %v1071 = vld [vmem:[%s183 + $0x90] sm:$0xf]
        %v1072 = vld [vmem:[%s183 + $0x94] sm:$0xf]
        %v1073 = vld [vmem:[%s183 + $0x98] sm:$0xf]
        %v1074 = vld [vmem:[%s183 + $0x9c] sm:$0xf]
        %v1075 = vld [vmem:[%s183 + $0xa0] sm:$0xf]
        %v1076 = vld [vmem:[%s183 + $0xa4] sm:$0xf]
        %v1077 = vld [vmem:[%s183 + $0xa8] sm:$0xf]
        %v1078 = vld [vmem:[%s183 + $0xac] sm:$0xf]
        %v1099 = vunpack.c.l.b16 %v1059
        %v1100 = vunpack.c.l.b16 %v1060
        %v1101 = vunpack.c.l.b16 %v1061
        %v1102 = vunpack.c.l.b16 %v1062
        %v1103 = vunpack.c.l.b16 %v1063
        %v1104 = vunpack.c.l.b16 %v1064
        %v1105 = vunpack.c.l.b16 %v1065
        %v1106 = vunpack.c.l.b16 %v1066
        %v1107 = vunpack.c.l.b16 %v1067
        %v1108 = vunpack.c.l.b16 %v1068
        %v1109 = vunpack.c.l.b16 %v1069
        %v1110 = vunpack.c.l.b16 %v1070
        %v1111 = vunpack.c.l.b16 %v1071
        %v1112 = vunpack.c.l.b16 %v1072
        %v1113 = vunpack.c.l.b16 %v1073
        %v1114 = vunpack.c.l.b16 %v1074
        %v1115 = vunpack.c.l.b16 %v1075
        %v1116 = vunpack.c.l.b16 %v1076
        %v1117 = vunpack.c.l.b16 %v1077
        %v1118 = vunpack.c.l.b16 %v1078
        %v1119 = vpack.c.b16 %v1100, %v1099
        %v1120 = vpack.c.b16 %v1102, %v1101
        %v1121 = vpack.c.b16 %v1104, %v1103
        %v1122 = vpack.c.b16 %v1106, %v1105
        %v1123 = vpack.c.b16 %v1108, %v1107
        %v1124 = vpack.c.b16 %v1110, %v1109
        %v1125 = vpack.c.b16 %v1112, %v1111
        %v1126 = vpack.c.b16 %v1114, %v1113
        %v1127 = vpack.c.b16 %v1116, %v1115
        %v1128 = vpack.c.b16 %v1118, %v1117
        %1139 = vmatprep.subr.bf16.mxu0 0
        %1140 = vmatpush1.bf16.msra.mxu0 %v1119
        %1141 = vmatprep.subr.bf16.mxu0 0
        %1142 = vmatpush1.bf16.msra.mxu0 %v1120
        %1143 = vmatprep.subr.bf16.mxu0 0
        %1144 = vmatpush1.bf16.msra.mxu0 %v1121
        %1145 = vmatprep.subr.bf16.mxu0 0
        %1146 = vmatpush1.bf16.msra.mxu0 %v1122
        %1147 = vmatprep.subr.bf16.mxu0 0
        %1148 = vmatpush1.bf16.msra.mxu0 %v1123
        %1149 = vmatprep.subr.bf16.mxu0 0
        %1150 = vmatpush1.bf16.msra.mxu0 %v1124
        %1151 = vmatprep.subr.bf16.mxu0 0
        %1152 = vmatpush1.bf16.msra.mxu0 %v1125
        %1153 = vmatprep.subr.bf16.mxu0 0
        %1154 = vmatpush1.bf16.msra.mxu0 %v1126
        %1155 = vmatprep.subr.bf16.mxu0 0
        %1156 = vmatpush1.bf16.msra.mxu0 %v1127
        %1157 = vmatprep.subr.bf16.mxu0 0
        %1158 = vmatpush1.bf16.msra.mxu0 %v1128
        %1159 = vmatprep.subr.bf16.mxu0 0
        %1160 = vmatpush1.bf16.msra.mxu0 0
        %1161 = vmatprep.subr.bf16.mxu0 0
        %1162 = vmatpush1.bf16.msra.mxu0 0
        %1163 = vmatprep.subr.bf16.mxu0 0
        %1164 = vmatpush1.bf16.msra.mxu0 0
        %1165 = vmatprep.subr.bf16.mxu0 0
        %1166 = vmatpush1.bf16.msra.mxu0 0
        %1167 = vmatprep.subr.bf16.mxu0 0
        %1168 = vmatpush1.bf16.msra.mxu0 0
        %1169 = vmatprep.subr.bf16.mxu0 0
        %1170 = vmatpush1.bf16.msra.mxu0 0
        %1171 = vmatprep.mubr.bf16.mxu0 %v325
        %1172 = vmatmul.mubr.bf16.gmra.mrb[0].mxu0 %v257
        %v1173 = vpop.f32.mrb[0].mxu0
        %v1174 = vadd.f32 %v216, %v1173
        %v1175 = vpop.f32.mrb[0].mxu0
        %v1176 = vpop.f32.mrb[0].mxu0
        %v1177 = vadd.f32 %v221, %v1176
        %v1178 = vpop.f32.mrb[0].mxu0
        %1179 = vmatprep.mubr.bf16.mxu0 %v328
        %1180 = vmatmul.mubr.bf16.gmra.mrb[0].mxu0 %v259
        %v1181 = vpop.f32.mrb[0].mxu0
        %v1182 = vadd.f32 %v226, %v1181
        %v1183 = vpop.f32.mrb[0].mxu0
        %v1184 = vpop.f32.mrb[0].mxu0
        %v1185 = vpop.f32.mrb[0].mxu0
        %1186 = vdwg.mxu0
        %v1187 = vmax.f32 %v1174, 0.0
        %v1188 = vmax.f32 %v1177, 0.0
        %v1189 = vmax.f32 %v1182, 0.0
        %s1190 = scalar_lea.vmem %s205, 144 [#allocation5]
        %1191 = vst [vmem:[%s1190] sm:$0xff] %v1187
        %1192 = vst [vmem:[%s1190 + $0x8] sm:$0xff] %v1188
        %1193 = vst [vmem:[%s1190 + $0x10] sm:$0xff] %v1189
        %v1194 = vld [vmem:[%s183 + $0x70] sm:$0xf]
        %v1195 = vld [vmem:[%s183 + $0x74] sm:$0xf]
        %v1196 = vld [vmem:[%s183 + $0x78] sm:$0xf]
        %v1197 = vld [vmem:[%s183 + $0x7c] sm:$0xf]
        %v1198 = vld [vmem:[%s183 + $0x80] sm:$0xf]
        %v1199 = vld [vmem:[%s183 + $0x84] sm:$0xf]
        %v1200 = vld [vmem:[%s183 + $0x88] sm:$0xf]
        %v1201 = vld [vmem:[%s183 + $0x8c] sm:$0xf]
        %v1202 = vld [vmem:[%s183 + $0x90] sm:$0xf]
        %v1203 = vld [vmem:[%s183 + $0x94] sm:$0xf]
        %v1204 = vld [vmem:[%s183 + $0x98] sm:$0xf]
        %v1205 = vld [vmem:[%s183 + $0x9c] sm:$0xf]
        %v1206 = vld [vmem:[%s183 + $0xa0] sm:$0xf]
        %v1207 = vld [vmem:[%s183 + $0xa4] sm:$0xf]
        %v1208 = vld [vmem:[%s183 + $0xa8] sm:$0xf]
        %v1209 = vld [vmem:[%s183 + $0xac] sm:$0xf]
        %v1210 = vld [vmem:[%s183 + $0xb0] sm:$0xf]
        %v1211 = vld [vmem:[%s183 + $0xb4] sm:$0xf]
        %v1212 = vld [vmem:[%s183 + $0xb8] sm:$0xf]
        %v1213 = vld [vmem:[%s183 + $0xbc] sm:$0xf]
        %v1234 = vunpack.c.l.b16 %v1194
        %v1235 = vunpack.c.l.b16 %v1195
        %v1236 = vunpack.c.l.b16 %v1196
        %v1237 = vunpack.c.l.b16 %v1197
        %v1238 = vunpack.c.l.b16 %v1198
        %v1239 = vunpack.c.l.b16 %v1199
        %v1240 = vunpack.c.l.b16 %v1200
        %v1241 = vunpack.c.l.b16 %v1201
        %v1242 = vunpack.c.l.b16 %v1202
        %v1243 = vunpack.c.l.b16 %v1203
        %v1244 = vunpack.c.l.b16 %v1204
        %v1245 = vunpack.c.l.b16 %v1205
        %v1246 = vunpack.c.l.b16 %v1206
        %v1247 = vunpack.c.l.b16 %v1207
        %v1248 = vunpack.c.l.b16 %v1208
        %v1249 = vunpack.c.l.b16 %v1209
        %v1250 = vunpack.c.l.b16 %v1210
        %v1251 = vunpack.c.l.b16 %v1211
        %v1252 = vunpack.c.l.b16 %v1212
        %v1253 = vunpack.c.l.b16 %v1213
        %v1254 = vpack.c.b16 %v1235, %v1234
        %v1255 = vpack.c.b16 %v1237, %v1236
        %v1256 = vpack.c.b16 %v1239, %v1238
        %v1257 = vpack.c.b16 %v1241, %v1240
        %v1258 = vpack.c.b16 %v1243, %v1242
        %v1259 = vpack.c.b16 %v1245, %v1244
        %v1260 = vpack.c.b16 %v1247, %v1246
        %v1261 = vpack.c.b16 %v1249, %v1248
        %v1262 = vpack.c.b16 %v1251, %v1250
        %v1263 = vpack.c.b16 %v1253, %v1252
        %1274 = vmatprep.subr.bf16.mxu0 0
        %1275 = vmatpush1.bf16.msra.mxu0 %v1254
        %1276 = vmatprep.subr.bf16.mxu0 0
        %1277 = vmatpush1.bf16.msra.mxu0 %v1255
        %1278 = vmatprep.subr.bf16.mxu0 0
        %1279 = vmatpush1.bf16.msra.mxu0 %v1256
        %1280 = vmatprep.subr.bf16.mxu0 0
        %1281 = vmatpush1.bf16.msra.mxu0 %v1257
        %1282 = vmatprep.subr.bf16.mxu0 0
        %1283 = vmatpush1.bf16.msra.mxu0 %v1258
        %1284 = vmatprep.subr.bf16.mxu0 0
        %1285 = vmatpush1.bf16.msra.mxu0 %v1259
        %1286 = vmatprep.subr.bf16.mxu0 0
        %1287 = vmatpush1.bf16.msra.mxu0 %v1260
        %1288 = vmatprep.subr.bf16.mxu0 0
        %1289 = vmatpush1.bf16.msra.mxu0 %v1261
        %1290 = vmatprep.subr.bf16.mxu0 0
        %1291 = vmatpush1.bf16.msra.mxu0 %v1262
        %1292 = vmatprep.subr.bf16.mxu0 0
        %1293 = vmatpush1.bf16.msra.mxu0 %v1263
        %1294 = vmatprep.subr.bf16.mxu0 0
        %1295 = vmatpush1.bf16.msra.mxu0 0
        %1296 = vmatprep.subr.bf16.mxu0 0
        %1297 = vmatpush1.bf16.msra.mxu0 0
        %1298 = vmatprep.subr.bf16.mxu0 0
        %1299 = vmatpush1.bf16.msra.mxu0 0
        %1300 = vmatprep.subr.bf16.mxu0 0
        %1301 = vmatpush1.bf16.msra.mxu0 0
        %1302 = vmatprep.subr.bf16.mxu0 0
        %1303 = vmatpush1.bf16.msra.mxu0 0
        %1304 = vmatprep.subr.bf16.mxu0 0
        %1305 = vmatpush1.bf16.msra.mxu0 0
        %1306 = vmatprep.mubr.bf16.mxu0 %v325
        %1307 = vmatmul.mubr.bf16.gmra.mrb[0].mxu0 %v257
        %v1308 = vpop.f32.mrb[0].mxu0
        %v1309 = vadd.f32 %v216, %v1308
        %v1310 = vpop.f32.mrb[0].mxu0
        %v1311 = vpop.f32.mrb[0].mxu0
        %v1312 = vadd.f32 %v221, %v1311
        %v1313 = vpop.f32.mrb[0].mxu0
        %1314 = vmatprep.mubr.bf16.mxu0 %v328
        %1315 = vmatmul.mubr.bf16.gmra.mrb[0].mxu0 %v259
        %v1316 = vpop.f32.mrb[0].mxu0
        %v1317 = vadd.f32 %v226, %v1316
        %v1318 = vpop.f32.mrb[0].mxu0
        %v1319 = vpop.f32.mrb[0].mxu0
        %v1320 = vpop.f32.mrb[0].mxu0
        %1321 = vdwg.mxu0
        %v1322 = vmax.f32 %v1309, 0.0
        %v1323 = vmax.f32 %v1312, 0.0
        %v1324 = vmax.f32 %v1317, 0.0
        %s1325 = scalar_lea.vmem %s205, 168 [#allocation5]
        %1326 = vst [vmem:[%s1325] sm:$0xff] %v1322
        %1327 = vst [vmem:[%s1325 + $0x8] sm:$0xff] %v1323
        %1328 = vst [vmem:[%s1325 + $0x10] sm:$0xff] %v1324
        %s1329 = sand.u32 %s112, 1
        %s1330 = scalar_lea.sflag [#allocation4], %s1329
        %s1331 = sand.u32 %s112, 1
        %s1332 = smul.addr %s1331, 192
        %s1333 = scalar_lea.vmem [#allocation5], %s1332
        // Predicated region
        $region37: #{tpu_custom_call.1} parent=31 // pred_check
          %p1334 = pneg %p122
        $region38: #{tpu_custom_call.1} parent=31 // pred_check_branch
          %1336 = sbr.rel (%p1334) target = $region40
        $region39: #{tpu_custom_call.1} parent=31 // pred_region
          %s1338 = ssub.s32 3072, 3072
          %1339 = vsyncadd %s1330, %s1338
          %s1340 = smul.addr %s24, 24
          %s1341 = sadd.s32 %s25, %s1340
          %s1342 = smul.addr %s1341, 128
          %s1343 = scalar_lea.hbm %s3, %s1342
          %s1344 = sshll.u32 %s1333, 4
          %s1345 = int_to_ptr.vmem [resolvable:$true] %s1344
          %1350 = dma.vmem_to_hbm [thread:$0]  %s1345, 3072, %s1343, %s1330, 128, 128, 8
        $region40: #{tpu_custom_call.1} parent=31 // pred_fallthru
          _
      $region32: #{tpu_custom_call.1} parent=5 // pred_fallthru
        _
      %p1351 = scmp.le.s32.totalorder 2, %s15
      // Predicated region
      $region41: #{tpu_custom_call.1} parent=5 // pred_check
        %p1352 = pneg %p1351
      $region42: #{tpu_custom_call.1} parent=5 // pred_check_branch
        %1354 = sbr.rel (%p1352) target = $region44
      $region43: #{tpu_custom_call.1} parent=5 // pred_region
        %s1355 = ssub.s32 %s15, 2
        // Predicated region
        $region45: #{tpu_custom_call.1} parent=43 // pred_check
          %p1356 = pneg %p128
        $region46: #{tpu_custom_call.1} parent=43 // pred_check_branch
          %1358 = sbr.rel (%p1356) target = $region48
        $region47: #{tpu_custom_call.1} parent=43 // pred_region
          %s1359 = sand.u32 %s113, 1
          %s1360 = scalar_lea.sflag [#allocation4], %s1359
          %s1361 = sand.u32 %s113, 1
          %s1362 = smul.addr %s1361, 192
          %s1363 = scalar_lea.vmem [#allocation5], %s1362
          %1364 = dma.done %s1360, 3072
        $region48: #{tpu_custom_call.1} parent=43 // pred_fallthru
          _
      $region44: #{tpu_custom_call.1} parent=5 // pred_fallthru
        _
    $region6: #{tpu_custom_call.1} parent=1 // loop_footer
      %s19 = sadd.s32 1, %s15
    $region7: #{tpu_custom_call.1} parent=1 // loop_footer_branch
      %14 = sbr.rel target = $region3
    $region8: #{tpu_custom_call.1} parent=1 // loop_exit
      _
    %1365 = vsyncpa [#allocation3], 1
    %s1366 = scalar_lea.sflag [#allocation3], 1
    %1367 = vsyncpa %s1366, 1
    %1368 = vsyncpa [#allocation4], 1
    %s1369 = scalar_lea.sflag [#allocation4], 1
    %1370 = vsyncpa %s1369, 1

</llo_original>
